<compile_context>
chip_gen: v5e
topology: v5e:2x2
jax: 0.10.0
libtpu: 0.0.40
codegen_flags: <defaults>
</compile_context>

<pallas_src>
import functools

import jax
import jax.numpy as jnp
from jax import lax
from jax.experimental import pallas as pl
from jax.experimental.pallas import tpu as pltpu

NEG_LARGE = -1e30
LEAKY_SLOPE = 0.2  # torch_geometric GATConv default negative_slope


# ------------------------------ fused kernel ------------------------------- #

def _extra_forward_kernel(num_layers,
                          hp_ref,                                  # SMEM (2,)
                          x_ref, A_ref, b_ref, adj_ref,
                          wsrc_ref, wdst_ref,
                          z_ref, comm_ref):
    N, D = x_ref.shape
    step = hp_ref[0]
    thr = hp_ref[1]

    # loop-invariant values, loaded from VMEM once and kept in vregs
    adj_pos = adj_ref[...] > 0.0                                   # (N, N)
    row = lax.broadcasted_iota(jnp.int32, (N, N), 0)
    col = lax.broadcasted_iota(jnp.int32, (N, N), 1)
    diag = row == col
    offedge = jnp.logical_and(adj_pos, jnp.logical_not(diag))
    w_src = wsrc_ref[...]                                          # (D, 1)
    w_dst = wdst_ref[...]                                          # (1, D)
    A_full = A_ref[...]                                            # (N, D, D)
    b_full = b_ref[...]                                            # (N, D)

    def attention(x_attn, threshold):
        """GAT-style row-softmax mixing matrix + kept off-diagonal edge mask."""
        # W folded into w_src/w_dst on the host: no per-layer x @ W, no
        # cross-lane sum-reduce on the serial chain.
        s_src = jnp.dot(x_attn, w_src, preferred_element_type=jnp.float32)   # (N,1)
        s_dst = jnp.einsum("od,nd->on", w_dst, x_attn,
                           preferred_element_type=jnp.float32)               # (1,N)
        e = s_src + s_dst
        e = jnp.where(e > 0, e, LEAKY_SLOPE * e)                   # LeakyReLU
        e = jnp.where(adj_pos, e, NEG_LARGE)
        e = e - jnp.max(e, axis=-1, keepdims=True)
        p = jnp.exp(e)
        alpha = p * pl.reciprocal(jnp.sum(p, axis=-1, keepdims=True),
                                  approx=True)
        # adaptive-communication threshold (consistent >= for keep & count)
        keep = jnp.logical_or(alpha >= threshold, diag)
        alpha = jnp.where(keep, alpha, 0.0)
        kept = jnp.where(jnp.logical_and(keep, offedge), 1.0, 0.0)  # (N, N)
        return alpha, kept

    def quad(y):
        # 2 * (A @ y) per node.
        if D >= 128:
            # MXU-scale: batched contraction keeps the reduction off the XLU
            # and avoids spilling the (N, D, D) transient product.
            return 2.0 * jnp.einsum("nde,ne->nd", A_full, y,
                                    preferred_element_type=jnp.float32)
        # small D: keep it on the VPU (per-node MXU matvecs waste the array)
        return 2.0 * jnp.sum(A_full * y[:, None, :], axis=-1)

    x_init = x_ref[...]

    # ----- layer 0:  x = conv(z_0) - step * grad(A, b, z_0),  z_0 = data.x ---
    alpha0, kept0 = attention(x_init, 0.0)       # init conv uses threshold=0
    g_init = quad(x_init) + b_full
    x_new = (jnp.dot(alpha0, x_init, preferred_element_type=jnp.float32)
             - step * g_init)

    # per-layer state; v is carried column-broadcast to (N, D) so every
    # operand stays lane-dense (equivalent to the torch (N, 1) column).
    x1 = x_new
    x0 = x_init
    z0 = x_init
    v = jnp.ones((N, D), jnp.float32)
    sent_acc = kept0                               # (N, N) mask accumulator

    def layer(_, carry):
        x1, x0, z0, v, sent_acc = carry
        z = x1 / v                                 # exact divide (gradient path)
        gdiff = quad(z - z0)                       # g1 - g0 (the b terms cancel)
        alpha, kept = attention(x1, thr)
        cx1 = jnp.dot(alpha, x1, preferred_element_type=jnp.float32)
        cx0 = jnp.dot(alpha, x0, preferred_element_type=jnp.float32)
        cv = jnp.dot(alpha, v, preferred_element_type=jnp.float32)
        x_new = cx1 + x1 - 0.5 * cx0 - 0.5 * x0 - step * gdiff
        return x_new, x1, z, cv, sent_acc + kept

    x1, x0, z0, v, sent_acc = lax.fori_loop(
        1, num_layers, layer, (x1, x0, z0, v, sent_acc), unroll=True)

    # z0 holds the z from the start of the last iteration, exactly what the
    # torch module returns (num_layers == 1 is unsupported there as well).
    z_ref[...] = z0
    comm_ref[0] = (jnp.sum(sent_acc) + 0.5).astype(jnp.int32)


# ------------------------------ pallas_call glue ---------------------------- #

def _full_spec(shape):
    # whole-array block (block_shape == array dims satisfies TPU tiling rules);
    # index_map receives (grid_idx, scalar_prefetch_ref)
    n = len(shape)
    return pl.BlockSpec(shape, lambda *args, _n=n: (0,) * _n)


def extra_forward(x, A, b, adj, W, a_src, a_dst, step_size, threshold,
                  num_layers):
    N, D = x.shape
    hp = jnp.asarray([step_size, threshold], jnp.float32)
    # Fold the GAT linear transform into the attention vectors once, on the
    # host:  (x @ W) @ a_src^T == x @ (W @ a_src^T).
    w_src = jnp.dot(W, a_src.T)                    # (D, 1)
    w_dst = jnp.dot(a_dst, W.T)                    # (1, D)

    kernel = functools.partial(_extra_forward_kernel, int(num_layers))

    z, comm = pl.pallas_call(
        kernel,
        grid_spec=pltpu.PrefetchScalarGridSpec(
            num_scalar_prefetch=1,
            grid=(1,),
            in_specs=[_full_spec(x.shape), _full_spec(A.shape),
                      _full_spec(b.shape), _full_spec(adj.shape),
                      _full_spec(w_src.shape), _full_spec(w_dst.shape)],
            out_specs=(_full_spec((N, D)),
                       pl.BlockSpec(memory_space=pltpu.MemorySpace.SMEM)),
        ),
        out_shape=(jax.ShapeDtypeStruct((N, D), jnp.float32),
                   jax.ShapeDtypeStruct((1,), jnp.int32)),
        compiler_params=pltpu.CompilerParams(
            dimension_semantics=("arbitrary",),
            vmem_limit_bytes=32 * 1024 * 1024),
    )(hp, x, A, b, adj, w_src, w_dst)
    return z, comm[0]


# --------------------------------- model ----------------------------------- #

class NetExtraAdaptPallas:
    """JAX/Pallas port of Net_EXTRA_Adapt.forward (recording=False path)."""

    def __init__(self, dim, step_size, key):
        kw, ks, kd = jax.random.split(key, 3)
        scale = 1.0 / jnp.sqrt(jnp.float32(dim))
        self.W = jax.random.normal(kw, (dim, dim), jnp.float32) * scale
        self.a_src = jax.random.normal(ks, (1, dim), jnp.float32) * scale
        self.a_dst = jax.random.normal(kd, (1, dim), jnp.float32) * scale
        self.dim = dim
        self.step_size = float(step_size)

    def forward(self, x, A, b, edge_index, num_layers, threshold=0.0):
        N, _ = x.shape
        # dense adjacency with self-loops from edge_index (2, E)
        adj = jnp.zeros((N, N), jnp.float32)
        adj = adj.at[edge_index[0], edge_index[1]].set(1.0)
        adj = adj.at[jnp.arange(N), jnp.arange(N)].set(1.0)

        z, comm_cost = extra_forward(x, A, b, adj, self.W, self.a_src,
                                     self.a_dst, self.step_size,
                                     float(threshold), num_layers)
        return z, comm_cost


# ---------------------------------- demo ------------------------------------ #

if __name__ == "__main__":
    key = jax.random.PRNGKey(0)
    N, D = 8, 32                               # 8 nodes, feature dim 32
    k1, k2, k3, k4 = jax.random.split(key, 4)

    x = jax.random.normal(k1, (N, D), jnp.float32)
    M = jax.random.normal(k2, (N, D, D), jnp.float32) * 0.1
    A = jnp.einsum("ndk,nek->nde", M, M) + 0.5 * jnp.eye(D)[None]  # SPD per node
    b = jax.random.normal(k3, (N, D), jnp.float32)

    # bidirectional ring graph
    src = jnp.arange(N, dtype=jnp.int32)
    dst = (src + 1) % N
    edge_index = jnp.stack([jnp.concatenate([src, dst]),
                            jnp.concatenate([dst, src])])

    net = NetExtraAdaptPallas(dim=D, step_size=0.05, key=k4)
    z, comm_cost = net.forward(x, A, b, edge_index, num_layers=4, threshold=0.0)
    z = jax.block_until_ready(z)
    comm_cost = jax.block_until_ready(comm_cost)

    assert z.shape == (N, D)
    assert bool(jnp.all(jnp.isfinite(z)))
    assert int(comm_cost) >= 0
    print("KERNEL_OK")
</pallas_src>

<mosaic_0001>
module attributes {stable_mosaic.version = 11 : i64} {
  func.func @_extra_forward_kernel(%arg0: i32, %arg1: memref<2xf32, #tpu.memory_space<smem>>, %arg2: memref<8x32xf32, #tpu.memory_space<vmem>>, %arg3: memref<8x32x32xf32, #tpu.memory_space<vmem>>, %arg4: memref<8x32xf32, #tpu.memory_space<vmem>>, %arg5: memref<8x8xf32, #tpu.memory_space<vmem>>, %arg6: memref<32x1xf32, #tpu.memory_space<vmem>>, %arg7: memref<1x32xf32, #tpu.memory_space<vmem>>, %arg8: memref<8x32xf32, #tpu.memory_space<vmem>>, %arg9: memref<1xi32, #tpu.memory_space<smem>>) attributes {dimension_semantics = [#tpu.dimension_semantics<arbitrary>], iteration_bounds = array<i64: 1>, scalar_prefetch = 1 : i64, scratch_operands = 0 : i64, tpu.core_type = #tpu.core_type<tc>, window_params = [{pipeline_mode = #tpu.pipeline_mode<synchronous>, transform_indices = @transform_0, window_bounds = array<i64: 8, 32>}, {pipeline_mode = #tpu.pipeline_mode<synchronous>, transform_indices = @transform_1, window_bounds = array<i64: 8, 32, 32>}, {pipeline_mode = #tpu.pipeline_mode<synchronous>, transform_indices = @transform_2, window_bounds = array<i64: 8, 32>}, {pipeline_mode = #tpu.pipeline_mode<synchronous>, transform_indices = @transform_3, window_bounds = array<i64: 8, 8>}, {pipeline_mode = #tpu.pipeline_mode<synchronous>, transform_indices = @transform_4, window_bounds = array<i64: 32, 1>}, {pipeline_mode = #tpu.pipeline_mode<synchronous>, transform_indices = @transform_5, window_bounds = array<i64: 1, 32>}, {pipeline_mode = #tpu.pipeline_mode<synchronous>, transform_indices = @transform_6, window_bounds = array<i64: 8, 32>}, {transform_indices = @transform_7, window_bounds = array<i64: 1>}]} {
    %c0 = arith.constant 0 : index
    %0 = memref.load %arg1[%c0] : memref<2xf32, #tpu.memory_space<smem>>
    %c1 = arith.constant 1 : index
    %1 = memref.load %arg1[%c1] : memref<2xf32, #tpu.memory_space<smem>>
    %c0_0 = arith.constant 0 : index
    %c0_1 = arith.constant 0 : index
    %2 = vector.load %arg5[%c0_0, %c0_1] : memref<8x8xf32, #tpu.memory_space<vmem>>, vector<8x8xf32>
    %cst = arith.constant 0.000000e+00 : f32
    %3 = vector.broadcast %cst : f32 to vector<8x8xf32>
    %4 = arith.cmpf ogt, %2, %3 : vector<8x8xf32>
    %5 = tpu.iota {dimensions = array<i32: 0>} : vector<8x8xi32>
    %6 = tpu.iota {dimensions = array<i32: 1>} : vector<8x8xi32>
    %7 = arith.cmpi eq, %5, %6 : vector<8x8xi32>
    %cst_2 = arith.constant dense<true> : vector<8x8xi1>
    %8 = arith.xori %7, %cst_2 : vector<8x8xi1>
    %9 = arith.andi %4, %8 : vector<8x8xi1>
    %c0_3 = arith.constant 0 : index
    %c0_4 = arith.constant 0 : index
    %10 = vector.load %arg6[%c0_3, %c0_4] : memref<32x1xf32, #tpu.memory_space<vmem>>, vector<32x1xf32>
    %c0_5 = arith.constant 0 : index
    %c0_6 = arith.constant 0 : index
    %11 = vector.load %arg7[%c0_5, %c0_6] : memref<1x32xf32, #tpu.memory_space<vmem>>, vector<1x32xf32>
    %c0_7 = arith.constant 0 : index
    %c0_8 = arith.constant 0 : index
    %c0_9 = arith.constant 0 : index
    %12 = vector.load %arg3[%c0_7, %c0_8, %c0_9] : memref<8x32x32xf32, #tpu.memory_space<vmem>>, vector<8x32x32xf32>
    %c0_10 = arith.constant 0 : index
    %c0_11 = arith.constant 0 : index
    %13 = vector.load %arg4[%c0_10, %c0_11] : memref<8x32xf32, #tpu.memory_space<vmem>>, vector<8x32xf32>
    %c0_12 = arith.constant 0 : index
    %c0_13 = arith.constant 0 : index
    %14 = vector.load %arg2[%c0_12, %c0_13] : memref<8x32xf32, #tpu.memory_space<vmem>>, vector<8x32xf32>
    %cst_14 = arith.constant dense<0.000000e+00> : vector<8x1xf32>
    %15 = tpu.matmul %14, %10, %cst_14 {dimension_numbers = #tpu.dot_dimension_numbers<[1], [0], [0], [1], [0, 0, 1, 1], [], []>} : vector<8x32xf32>, vector<32x1xf32>, vector<8x1xf32> -> vector<8x1xf32>
    "tpu.trace_start"() <{level = 10 : i32, message = "od,nd->on"}> : () -> ()
    %cst_15 = arith.constant dense<0.000000e+00> : vector<1x8xf32>
    %16 = tpu.matmul %11, %14, %cst_15 {dimension_numbers = #tpu.dot_dimension_numbers<[1], [1], [0], [0], [0, 0, 1, 0], [], []>} : vector<1x32xf32>, vector<8x32xf32>, vector<1x8xf32> -> vector<1x8xf32>
    "tpu.trace_stop"() : () -> ()
    %17 = vector.broadcast %15 : vector<8x1xf32> to vector<8x8xf32>
    %18 = vector.broadcast %16 : vector<1x8xf32> to vector<8x8xf32>
    %19 = arith.addf %17, %18 : vector<8x8xf32>
    %cst_16 = arith.constant 0.000000e+00 : f32
    %20 = vector.broadcast %cst_16 : f32 to vector<8x8xf32>
    %21 = arith.cmpf ogt, %19, %20 : vector<8x8xf32>
    %cst_17 = arith.constant 2.000000e-01 : f32
    %22 = vector.broadcast %cst_17 : f32 to vector<8x8xf32>
    %23 = arith.mulf %22, %19 : vector<8x8xf32>
    %24 = arith.select %21, %19, %23 : vector<8x8xi1>, vector<8x8xf32>
    %cst_18 = arith.constant -1.000000e+30 : f32
    %25 = vector.broadcast %cst_18 : f32 to vector<8x8xf32>
    %26 = arith.select %4, %24, %25 : vector<8x8xi1>, vector<8x8xf32>
    %cst_19 = arith.constant dense<0xFF800000> : vector<8xf32>
    %27 = vector.multi_reduction <maximumf>, %26, %cst_19 [1] : vector<8x8xf32> to vector<8xf32>
    %28 = vector.shape_cast %27 : vector<8xf32> to vector<8x1xf32>
    %29 = vector.broadcast %28 : vector<8x1xf32> to vector<8x8xf32>
    %30 = arith.subf %26, %29 : vector<8x8xf32>
    %31 = math.exp %30 : vector<8x8xf32>
    %cst_20 = arith.constant dense<0.000000e+00> : vector<8xf32>
    %32 = vector.multi_reduction <add>, %31, %cst_20 [1] : vector<8x8xf32> to vector<8xf32>
    %33 = vector.shape_cast %32 : vector<8xf32> to vector<8x1xf32>
    %34 = tpu.reciprocal %33 {approx = true} : vector<8x1xf32> -> vector<8x1xf32>
    %35 = vector.broadcast %34 : vector<8x1xf32> to vector<8x8xf32>
    %36 = arith.mulf %31, %35 : vector<8x8xf32>
    %cst_21 = arith.constant 0.000000e+00 : f32
    %37 = vector.broadcast %cst_21 : f32 to vector<8x8xf32>
    %38 = arith.cmpf oge, %36, %37 : vector<8x8xf32>
    %39 = arith.ori %38, %7 : vector<8x8xi1>
    %cst_22 = arith.constant 0.000000e+00 : f32
    %40 = vector.broadcast %cst_22 : f32 to vector<8x8xf32>
    %41 = arith.select %39, %36, %40 : vector<8x8xi1>, vector<8x8xf32>
    %42 = arith.andi %39, %9 : vector<8x8xi1>
    %cst_23 = arith.constant 1.000000e+00 : f32
    %cst_24 = arith.constant 0.000000e+00 : f32
    %43 = vector.broadcast %cst_23 : f32 to vector<8x8xf32>
    %44 = vector.broadcast %cst_24 : f32 to vector<8x8xf32>
    %45 = arith.select %42, %43, %44 : vector<8x8xi1>, vector<8x8xf32>
    %46 = vector.shape_cast %14 : vector<8x32xf32> to vector<8x1x32xf32>
    %47 = vector.broadcast %46 : vector<8x1x32xf32> to vector<8x32x32xf32>
    %48 = arith.mulf %12, %47 : vector<8x32x32xf32>
    %cst_25 = arith.constant dense<0.000000e+00> : vector<8x32xf32>
    %49 = vector.multi_reduction <add>, %48, %cst_25 [2] : vector<8x32x32xf32> to vector<8x32xf32>
    %cst_26 = arith.constant 2.000000e+00 : f32
    %50 = vector.broadcast %cst_26 : f32 to vector<8x32xf32>
    %51 = arith.mulf %50, %49 : vector<8x32xf32>
    %52 = arith.addf %51, %13 : vector<8x32xf32>
    %cst_27 = arith.constant dense<0.000000e+00> : vector<8x32xf32>
    %53 = tpu.matmul %41, %14, %cst_27 {dimension_numbers = #tpu.dot_dimension_numbers<[1], [0], [0], [1], [0, 0, 1, 1], [], []>} : vector<8x8xf32>, vector<8x32xf32>, vector<8x32xf32> -> vector<8x32xf32>
    %54 = vector.broadcast %0 : f32 to vector<8x32xf32>
    %55 = arith.mulf %54, %52 : vector<8x32xf32>
    %56 = arith.subf %53, %55 : vector<8x32xf32>
    %cst_28 = arith.constant 1.000000e+00 : f32
    %57 = vector.broadcast %cst_28 : f32 to vector<8x32xf32>
    %c0_i32 = arith.constant 0 : i32
    %58 = arith.divf %56, %57 : vector<8x32xf32>
    %59 = arith.subf %58, %14 : vector<8x32xf32>
    %60 = vector.shape_cast %59 : vector<8x32xf32> to vector<8x1x32xf32>
    %61 = vector.broadcast %60 : vector<8x1x32xf32> to vector<8x32x32xf32>
    %62 = arith.mulf %12, %61 : vector<8x32x32xf32>
    %cst_29 = arith.constant dense<0.000000e+00> : vector<8x32xf32>
    %63 = vector.multi_reduction <add>, %62, %cst_29 [2] : vector<8x32x32xf32> to vector<8x32xf32>
    %cst_30 = arith.constant 2.000000e+00 : f32
    %64 = vector.broadcast %cst_30 : f32 to vector<8x32xf32>
    %65 = arith.mulf %64, %63 : vector<8x32xf32>
    %cst_31 = arith.constant dense<0.000000e+00> : vector<8x1xf32>
    %66 = tpu.matmul %56, %10, %cst_31 {dimension_numbers = #tpu.dot_dimension_numbers<[1], [0], [0], [1], [0, 0, 1, 1], [], []>} : vector<8x32xf32>, vector<32x1xf32>, vector<8x1xf32> -> vector<8x1xf32>
    "tpu.trace_start"() <{level = 10 : i32, message = "od,nd->on"}> : () -> ()
    %cst_32 = arith.constant dense<0.000000e+00> : vector<1x8xf32>
    %67 = tpu.matmul %11, %56, %cst_32 {dimension_numbers = #tpu.dot_dimension_numbers<[1], [1], [0], [0], [0, 0, 1, 0], [], []>} : vector<1x32xf32>, vector<8x32xf32>, vector<1x8xf32> -> vector<1x8xf32>
    "tpu.trace_stop"() : () -> ()
    %68 = vector.broadcast %66 : vector<8x1xf32> to vector<8x8xf32>
    %69 = vector.broadcast %67 : vector<1x8xf32> to vector<8x8xf32>
    %70 = arith.addf %68, %69 : vector<8x8xf32>
    %cst_33 = arith.constant 0.000000e+00 : f32
    %71 = vector.broadcast %cst_33 : f32 to vector<8x8xf32>
    %72 = arith.cmpf ogt, %70, %71 : vector<8x8xf32>
    %cst_34 = arith.constant 2.000000e-01 : f32
    %73 = vector.broadcast %cst_34 : f32 to vector<8x8xf32>
    %74 = arith.mulf %73, %70 : vector<8x8xf32>
    %75 = arith.select %72, %70, %74 : vector<8x8xi1>, vector<8x8xf32>
    %cst_35 = arith.constant -1.000000e+30 : f32
    %76 = vector.broadcast %cst_35 : f32 to vector<8x8xf32>
    %77 = arith.select %4, %75, %76 : vector<8x8xi1>, vector<8x8xf32>
    %cst_36 = arith.constant dense<0xFF800000> : vector<8xf32>
    %78 = vector.multi_reduction <maximumf>, %77, %cst_36 [1] : vector<8x8xf32> to vector<8xf32>
    %79 = vector.shape_cast %78 : vector<8xf32> to vector<8x1xf32>
    %80 = vector.broadcast %79 : vector<8x1xf32> to vector<8x8xf32>
    %81 = arith.subf %77, %80 : vector<8x8xf32>
    %82 = math.exp %81 : vector<8x8xf32>
    %cst_37 = arith.constant dense<0.000000e+00> : vector<8xf32>
    %83 = vector.multi_reduction <add>, %82, %cst_37 [1] : vector<8x8xf32> to vector<8xf32>
    %84 = vector.shape_cast %83 : vector<8xf32> to vector<8x1xf32>
    %85 = tpu.reciprocal %84 {approx = true} : vector<8x1xf32> -> vector<8x1xf32>
    %86 = vector.broadcast %85 : vector<8x1xf32> to vector<8x8xf32>
    %87 = arith.mulf %82, %86 : vector<8x8xf32>
    %88 = vector.broadcast %1 : f32 to vector<8x8xf32>
    %89 = arith.cmpf oge, %87, %88 : vector<8x8xf32>
    %90 = arith.ori %89, %7 : vector<8x8xi1>
    %cst_38 = arith.constant 0.000000e+00 : f32
    %91 = vector.broadcast %cst_38 : f32 to vector<8x8xf32>
    %92 = arith.select %90, %87, %91 : vector<8x8xi1>, vector<8x8xf32>
    %93 = arith.andi %90, %9 : vector<8x8xi1>
    %cst_39 = arith.constant 1.000000e+00 : f32
    %cst_40 = arith.constant 0.000000e+00 : f32
    %94 = vector.broadcast %cst_39 : f32 to vector<8x8xf32>
    %95 = vector.broadcast %cst_40 : f32 to vector<8x8xf32>
    %96 = arith.select %93, %94, %95 : vector<8x8xi1>, vector<8x8xf32>
    %cst_41 = arith.constant dense<0.000000e+00> : vector<8x32xf32>
    %97 = tpu.matmul %92, %56, %cst_41 {dimension_numbers = #tpu.dot_dimension_numbers<[1], [0], [0], [1], [0, 0, 1, 1], [], []>} : vector<8x8xf32>, vector<8x32xf32>, vector<8x32xf32> -> vector<8x32xf32>
    %cst_42 = arith.constant dense<0.000000e+00> : vector<8x32xf32>
    %98 = tpu.matmul %92, %14, %cst_42 {dimension_numbers = #tpu.dot_dimension_numbers<[1], [0], [0], [1], [0, 0, 1, 1], [], []>} : vector<8x8xf32>, vector<8x32xf32>, vector<8x32xf32> -> vector<8x32xf32>
    %cst_43 = arith.constant dense<0.000000e+00> : vector<8x32xf32>
    %99 = tpu.matmul %92, %57, %cst_43 {dimension_numbers = #tpu.dot_dimension_numbers<[1], [0], [0], [1], [0, 0, 1, 1], [], []>} : vector<8x8xf32>, vector<8x32xf32>, vector<8x32xf32> -> vector<8x32xf32>
    %100 = arith.addf %97, %56 : vector<8x32xf32>
    %cst_44 = arith.constant 5.000000e-01 : f32
    %101 = vector.broadcast %cst_44 : f32 to vector<8x32xf32>
    %102 = arith.mulf %101, %98 : vector<8x32xf32>
    %103 = arith.subf %100, %102 : vector<8x32xf32>
    %cst_45 = arith.constant 5.000000e-01 : f32
    %104 = vector.broadcast %cst_45 : f32 to vector<8x32xf32>
    %105 = arith.mulf %104, %14 : vector<8x32xf32>
    %106 = arith.subf %103, %105 : vector<8x32xf32>
    %107 = vector.broadcast %0 : f32 to vector<8x32xf32>
    %108 = arith.mulf %107, %65 : vector<8x32xf32>
    %109 = arith.subf %106, %108 : vector<8x32xf32>
    %110 = arith.addf %45, %96 : vector<8x8xf32>
    %c1_i32 = arith.constant 1 : i32
    %111 = arith.divf %109, %99 : vector<8x32xf32>
    %112 = arith.subf %111, %58 : vector<8x32xf32>
    %113 = vector.shape_cast %112 : vector<8x32xf32> to vector<8x1x32xf32>
    %114 = vector.broadcast %113 : vector<8x1x32xf32> to vector<8x32x32xf32>
    %115 = arith.mulf %12, %114 : vector<8x32x32xf32>
    %cst_46 = arith.constant dense<0.000000e+00> : vector<8x32xf32>
    %116 = vector.multi_reduction <add>, %115, %cst_46 [2] : vector<8x32x32xf32> to vector<8x32xf32>
    %cst_47 = arith.constant 2.000000e+00 : f32
    %117 = vector.broadcast %cst_47 : f32 to vector<8x32xf32>
    %118 = arith.mulf %117, %116 : vector<8x32xf32>
    %cst_48 = arith.constant dense<0.000000e+00> : vector<8x1xf32>
    %119 = tpu.matmul %109, %10, %cst_48 {dimension_numbers = #tpu.dot_dimension_numbers<[1], [0], [0], [1], [0, 0, 1, 1], [], []>} : vector<8x32xf32>, vector<32x1xf32>, vector<8x1xf32> -> vector<8x1xf32>
    "tpu.trace_start"() <{level = 10 : i32, message = "od,nd->on"}> : () -> ()
    %cst_49 = arith.constant dense<0.000000e+00> : vector<1x8xf32>
    %120 = tpu.matmul %11, %109, %cst_49 {dimension_numbers = #tpu.dot_dimension_numbers<[1], [1], [0], [0], [0, 0, 1, 0], [], []>} : vector<1x32xf32>, vector<8x32xf32>, vector<1x8xf32> -> vector<1x8xf32>
    "tpu.trace_stop"() : () -> ()
    %121 = vector.broadcast %119 : vector<8x1xf32> to vector<8x8xf32>
    %122 = vector.broadcast %120 : vector<1x8xf32> to vector<8x8xf32>
    %123 = arith.addf %121, %122 : vector<8x8xf32>
    %cst_50 = arith.constant 0.000000e+00 : f32
    %124 = vector.broadcast %cst_50 : f32 to vector<8x8xf32>
    %125 = arith.cmpf ogt, %123, %124 : vector<8x8xf32>
    %cst_51 = arith.constant 2.000000e-01 : f32
    %126 = vector.broadcast %cst_51 : f32 to vector<8x8xf32>
    %127 = arith.mulf %126, %123 : vector<8x8xf32>
    %128 = arith.select %125, %123, %127 : vector<8x8xi1>, vector<8x8xf32>
    %cst_52 = arith.constant -1.000000e+30 : f32
    %129 = vector.broadcast %cst_52 : f32 to vector<8x8xf32>
    %130 = arith.select %4, %128, %129 : vector<8x8xi1>, vector<8x8xf32>
    %cst_53 = arith.constant dense<0xFF800000> : vector<8xf32>
    %131 = vector.multi_reduction <maximumf>, %130, %cst_53 [1] : vector<8x8xf32> to vector<8xf32>
    %132 = vector.shape_cast %131 : vector<8xf32> to vector<8x1xf32>
    %133 = vector.broadcast %132 : vector<8x1xf32> to vector<8x8xf32>
    %134 = arith.subf %130, %133 : vector<8x8xf32>
    %135 = math.exp %134 : vector<8x8xf32>
    %cst_54 = arith.constant dense<0.000000e+00> : vector<8xf32>
    %136 = vector.multi_reduction <add>, %135, %cst_54 [1] : vector<8x8xf32> to vector<8xf32>
    %137 = vector.shape_cast %136 : vector<8xf32> to vector<8x1xf32>
    %138 = tpu.reciprocal %137 {approx = true} : vector<8x1xf32> -> vector<8x1xf32>
    %139 = vector.broadcast %138 : vector<8x1xf32> to vector<8x8xf32>
    %140 = arith.mulf %135, %139 : vector<8x8xf32>
    %141 = vector.broadcast %1 : f32 to vector<8x8xf32>
    %142 = arith.cmpf oge, %140, %141 : vector<8x8xf32>
    %143 = arith.ori %142, %7 : vector<8x8xi1>
    %cst_55 = arith.constant 0.000000e+00 : f32
    %144 = vector.broadcast %cst_55 : f32 to vector<8x8xf32>
    %145 = arith.select %143, %140, %144 : vector<8x8xi1>, vector<8x8xf32>
    %146 = arith.andi %143, %9 : vector<8x8xi1>
    %cst_56 = arith.constant 1.000000e+00 : f32
    %cst_57 = arith.constant 0.000000e+00 : f32
    %147 = vector.broadcast %cst_56 : f32 to vector<8x8xf32>
    %148 = vector.broadcast %cst_57 : f32 to vector<8x8xf32>
    %149 = arith.select %146, %147, %148 : vector<8x8xi1>, vector<8x8xf32>
    %cst_58 = arith.constant dense<0.000000e+00> : vector<8x32xf32>
    %150 = tpu.matmul %145, %109, %cst_58 {dimension_numbers = #tpu.dot_dimension_numbers<[1], [0], [0], [1], [0, 0, 1, 1], [], []>} : vector<8x8xf32>, vector<8x32xf32>, vector<8x32xf32> -> vector<8x32xf32>
    %cst_59 = arith.constant dense<0.000000e+00> : vector<8x32xf32>
    %151 = tpu.matmul %145, %56, %cst_59 {dimension_numbers = #tpu.dot_dimension_numbers<[1], [0], [0], [1], [0, 0, 1, 1], [], []>} : vector<8x8xf32>, vector<8x32xf32>, vector<8x32xf32> -> vector<8x32xf32>
    %cst_60 = arith.constant dense<0.000000e+00> : vector<8x32xf32>
    %152 = tpu.matmul %145, %99, %cst_60 {dimension_numbers = #tpu.dot_dimension_numbers<[1], [0], [0], [1], [0, 0, 1, 1], [], []>} : vector<8x8xf32>, vector<8x32xf32>, vector<8x32xf32> -> vector<8x32xf32>
    %153 = arith.addf %150, %109 : vector<8x32xf32>
    %cst_61 = arith.constant 5.000000e-01 : f32
    %154 = vector.broadcast %cst_61 : f32 to vector<8x32xf32>
    %155 = arith.mulf %154, %151 : vector<8x32xf32>
    %156 = arith.subf %153, %155 : vector<8x32xf32>
    %cst_62 = arith.constant 5.000000e-01 : f32
    %157 = vector.broadcast %cst_62 : f32 to vector<8x32xf32>
    %158 = arith.mulf %157, %56 : vector<8x32xf32>
    %159 = arith.subf %156, %158 : vector<8x32xf32>
    %160 = vector.broadcast %0 : f32 to vector<8x32xf32>
    %161 = arith.mulf %160, %118 : vector<8x32xf32>
    %162 = arith.subf %159, %161 : vector<8x32xf32>
    %163 = arith.addf %110, %149 : vector<8x8xf32>
    %c2_i32 = arith.constant 2 : i32
    %164 = arith.divf %162, %152 : vector<8x32xf32>
    %165 = arith.subf %164, %111 : vector<8x32xf32>
    %166 = vector.shape_cast %165 : vector<8x32xf32> to vector<8x1x32xf32>
    %167 = vector.broadcast %166 : vector<8x1x32xf32> to vector<8x32x32xf32>
    %168 = arith.mulf %12, %167 : vector<8x32x32xf32>
    %cst_63 = arith.constant dense<0.000000e+00> : vector<8x32xf32>
    %169 = vector.multi_reduction <add>, %168, %cst_63 [2] : vector<8x32x32xf32> to vector<8x32xf32>
    %cst_64 = arith.constant 2.000000e+00 : f32
    %170 = vector.broadcast %cst_64 : f32 to vector<8x32xf32>
    %171 = arith.mulf %170, %169 : vector<8x32xf32>
    %cst_65 = arith.constant dense<0.000000e+00> : vector<8x1xf32>
    %172 = tpu.matmul %162, %10, %cst_65 {dimension_numbers = #tpu.dot_dimension_numbers<[1], [0], [0], [1], [0, 0, 1, 1], [], []>} : vector<8x32xf32>, vector<32x1xf32>, vector<8x1xf32> -> vector<8x1xf32>
    "tpu.trace_start"() <{level = 10 : i32, message = "od,nd->on"}> : () -> ()
    %cst_66 = arith.constant dense<0.000000e+00> : vector<1x8xf32>
    %173 = tpu.matmul %11, %162, %cst_66 {dimension_numbers = #tpu.dot_dimension_numbers<[1], [1], [0], [0], [0, 0, 1, 0], [], []>} : vector<1x32xf32>, vector<8x32xf32>, vector<1x8xf32> -> vector<1x8xf32>
    "tpu.trace_stop"() : () -> ()
    %174 = vector.broadcast %172 : vector<8x1xf32> to vector<8x8xf32>
    %175 = vector.broadcast %173 : vector<1x8xf32> to vector<8x8xf32>
    %176 = arith.addf %174, %175 : vector<8x8xf32>
    %cst_67 = arith.constant 0.000000e+00 : f32
    %177 = vector.broadcast %cst_67 : f32 to vector<8x8xf32>
    %178 = arith.cmpf ogt, %176, %177 : vector<8x8xf32>
    %cst_68 = arith.constant 2.000000e-01 : f32
    %179 = vector.broadcast %cst_68 : f32 to vector<8x8xf32>
    %180 = arith.mulf %179, %176 : vector<8x8xf32>
    %181 = arith.select %178, %176, %180 : vector<8x8xi1>, vector<8x8xf32>
    %cst_69 = arith.constant -1.000000e+30 : f32
    %182 = vector.broadcast %cst_69 : f32 to vector<8x8xf32>
    %183 = arith.select %4, %181, %182 : vector<8x8xi1>, vector<8x8xf32>
    %cst_70 = arith.constant dense<0xFF800000> : vector<8xf32>
    %184 = vector.multi_reduction <maximumf>, %183, %cst_70 [1] : vector<8x8xf32> to vector<8xf32>
    %185 = vector.shape_cast %184 : vector<8xf32> to vector<8x1xf32>
    %186 = vector.broadcast %185 : vector<8x1xf32> to vector<8x8xf32>
    %187 = arith.subf %183, %186 : vector<8x8xf32>
    %188 = math.exp %187 : vector<8x8xf32>
    %cst_71 = arith.constant dense<0.000000e+00> : vector<8xf32>
    %189 = vector.multi_reduction <add>, %188, %cst_71 [1] : vector<8x8xf32> to vector<8xf32>
    %190 = vector.shape_cast %189 : vector<8xf32> to vector<8x1xf32>
    %191 = tpu.reciprocal %190 {approx = true} : vector<8x1xf32> -> vector<8x1xf32>
    %192 = vector.broadcast %191 : vector<8x1xf32> to vector<8x8xf32>
    %193 = arith.mulf %188, %192 : vector<8x8xf32>
    %194 = vector.broadcast %1 : f32 to vector<8x8xf32>
    %195 = arith.cmpf oge, %193, %194 : vector<8x8xf32>
    %196 = arith.ori %195, %7 : vector<8x8xi1>
    %cst_72 = arith.constant 0.000000e+00 : f32
    %197 = vector.broadcast %cst_72 : f32 to vector<8x8xf32>
    %198 = arith.select %196, %193, %197 : vector<8x8xi1>, vector<8x8xf32>
    %199 = arith.andi %196, %9 : vector<8x8xi1>
    %cst_73 = arith.constant 1.000000e+00 : f32
    %cst_74 = arith.constant 0.000000e+00 : f32
    %200 = vector.broadcast %cst_73 : f32 to vector<8x8xf32>
    %201 = vector.broadcast %cst_74 : f32 to vector<8x8xf32>
    %202 = arith.select %199, %200, %201 : vector<8x8xi1>, vector<8x8xf32>
    %cst_75 = arith.constant dense<0.000000e+00> : vector<8x32xf32>
    %203 = tpu.matmul %198, %162, %cst_75 {dimension_numbers = #tpu.dot_dimension_numbers<[1], [0], [0], [1], [0, 0, 1, 1], [], []>} : vector<8x8xf32>, vector<8x32xf32>, vector<8x32xf32> -> vector<8x32xf32>
    %cst_76 = arith.constant dense<0.000000e+00> : vector<8x32xf32>
    %204 = tpu.matmul %198, %109, %cst_76 {dimension_numbers = #tpu.dot_dimension_numbers<[1], [0], [0], [1], [0, 0, 1, 1], [], []>} : vector<8x8xf32>, vector<8x32xf32>, vector<8x32xf32> -> vector<8x32xf32>
    %cst_77 = arith.constant dense<0.000000e+00> : vector<8x32xf32>
    %205 = tpu.matmul %198, %152, %cst_77 {dimension_numbers = #tpu.dot_dimension_numbers<[1], [0], [0], [1], [0, 0, 1, 1], [], []>} : vector<8x8xf32>, vector<8x32xf32>, vector<8x32xf32> -> vector<8x32xf32>
    %206 = arith.addf %203, %162 : vector<8x32xf32>
    %cst_78 = arith.constant 5.000000e-01 : f32
    %207 = vector.broadcast %cst_78 : f32 to vector<8x32xf32>
    %208 = arith.mulf %207, %204 : vector<8x32xf32>
    %209 = arith.subf %206, %208 : vector<8x32xf32>
    %cst_79 = arith.constant 5.000000e-01 : f32
    %210 = vector.broadcast %cst_79 : f32 to vector<8x32xf32>
    %211 = arith.mulf %210, %109 : vector<8x32xf32>
    %212 = arith.subf %209, %211 : vector<8x32xf32>
    %213 = vector.broadcast %0 : f32 to vector<8x32xf32>
    %214 = arith.mulf %213, %171 : vector<8x32xf32>
    %215 = arith.subf %212, %214 : vector<8x32xf32>
    %216 = arith.addf %163, %202 : vector<8x8xf32>
    %c0_80 = arith.constant 0 : index
    %c0_81 = arith.constant 0 : index
    %217 = vector.load %arg8[%c0_80, %c0_81] : memref<8x32xf32, #tpu.memory_space<vmem>>, vector<8x32xf32>
    tpu.vector_store %arg8[%c0_80, %c0_81], %164 {strides = array<i32>} : memref<8x32xf32, #tpu.memory_space<vmem>>, vector<8x32xf32>,
    %218 = vector.shape_cast %216 : vector<8x8xf32> to vector<1x8x8xf32>
    %cst_82 = arith.constant dense<0.000000e+00> : vector<1xf32>
    %219 = vector.multi_reduction <add>, %218, %cst_82 [1, 2] : vector<1x8x8xf32> to vector<1xf32>
    %220 = vector.shape_cast %219 : vector<1xf32> to vector<1x1x1xf32>
    %221 = vector.extract %220[0, 0, 0] : f32 from vector<1x1x1xf32>
    %cst_83 = arith.constant 5.000000e-01 : f32
    %222 = arith.addf %221, %cst_83 : f32
    %223 = arith.fptosi %222 : f32 to i32
    %c0_84 = arith.constant 0 : index
    %224 = memref.load %arg9[%c0_84] : memref<1xi32, #tpu.memory_space<smem>>
    memref.store %223, %arg9[%c0_84] : memref<1xi32, #tpu.memory_space<smem>>
    return
  }
  func.func @transform_0(%arg0: i32, %arg1: memref<2xf32, #tpu.memory_space<smem>>) -> (i32, i32) {
    %c0_i32 = arith.constant 0 : i32
    %c0_i32_0 = arith.constant 0 : i32
    %c0_i32_1 = arith.constant 0 : i32
    return %c0_i32, %c0_i32_0 : i32, i32
  }
  func.func @transform_1(%arg0: i32, %arg1: memref<2xf32, #tpu.memory_space<smem>>) -> (i32, i32, i32) {
    %c0_i32 = arith.constant 0 : i32
    %c0_i32_0 = arith.constant 0 : i32
    %c0_i32_1 = arith.constant 0 : i32
    %c0_i32_2 = arith.constant 0 : i32
    return %c0_i32, %c0_i32_0, %c0_i32_1 : i32, i32, i32
  }
  func.func @transform_2(%arg0: i32, %arg1: memref<2xf32, #tpu.memory_space<smem>>) -> (i32, i32) {
    %c0_i32 = arith.constant 0 : i32
    %c0_i32_0 = arith.constant 0 : i32
    %c0_i32_1 = arith.constant 0 : i32
    return %c0_i32, %c0_i32_0 : i32, i32
  }
  func.func @transform_3(%arg0: i32, %arg1: memref<2xf32, #tpu.memory_space<smem>>) -> (i32, i32) {
    %c0_i32 = arith.constant 0 : i32
    %c0_i32_0 = arith.constant 0 : i32
    %c0_i32_1 = arith.constant 0 : i32
    return %c0_i32, %c0_i32_0 : i32, i32
  }
  func.func @transform_4(%arg0: i32, %arg1: memref<2xf32, #tpu.memory_space<smem>>) -> (i32, i32) {
    %c0_i32 = arith.constant 0 : i32
    %c0_i32_0 = arith.constant 0 : i32
    %c0_i32_1 = arith.constant 0 : i32
    return %c0_i32, %c0_i32_0 : i32, i32
  }
  func.func @transform_5(%arg0: i32, %arg1: memref<2xf32, #tpu.memory_space<smem>>) -> (i32, i32) {
    %c0_i32 = arith.constant 0 : i32
    %c0_i32_0 = arith.constant 0 : i32
    %c0_i32_1 = arith.constant 0 : i32
    return %c0_i32, %c0_i32_0 : i32, i32
  }
  func.func @transform_6(%arg0: i32, %arg1: memref<2xf32, #tpu.memory_space<smem>>) -> (i32, i32) {
    %c0_i32 = arith.constant 0 : i32
    %c0_i32_0 = arith.constant 0 : i32
    %c0_i32_1 = arith.constant 0 : i32
    return %c0_i32, %c0_i32_0 : i32, i32
  }
  func.func @transform_7(%arg0: i32, %arg1: memref<2xf32, #tpu.memory_space<smem>>) -> i32 {
    %c0_i32 = arith.constant 0 : i32
    %c0_i32_0 = arith.constant 0 : i32
    return %c0_i32 : i32
  }
}

</mosaic_0001>

<llo_original>
// kernel: tpu_custom_call.1
$region0: #{tpu_custom_call.1}
  #allocation0 [shape = 'u32[]', space=smem, size = 0x4, offset = 0x4, fixed_abs, tag = 'smem constant byte address 0x4 - core index']
  #allocation1 [shape = 'u32[72,128]{1,0:T(1,128)}', space=vmem, size = 0x9000, scoped, tag = 'internal scratch']
  #allocation2 [shape = 's32[1]{0}', space=sflag, size = 0x4, scoped, tag = 'scoped memory for tpu_custom_call.1']
  #allocation3 [shape = 'u8[512]{0}', space=smem, size = 0x200, scoped, tag = 'prefetched SMEM operand 0']
  %s0 = inlined_call_operand.vmem [shape: f32[2], index: 0, kind: input, shape index: {}]
  %s1 = inlined_call_operand.vmem [shape: f32[8,32], index: 1, kind: input, shape index: {}]
  %s2 = inlined_call_operand.hbm [shape: f32[8,32,32], index: 2, kind: input, shape index: {}]
  %s3 = inlined_call_operand.vmem [shape: f32[8,32], index: 3, kind: input, shape index: {}]
  %s4 = inlined_call_operand.vmem [shape: f32[8,8], index: 4, kind: input, shape index: {}]
  %s5 = inlined_call_operand.vmem [shape: f32[32,1], index: 5, kind: input, shape index: {}]
  %s6 = inlined_call_operand.vmem [shape: f32[1,32], index: 6, kind: input, shape index: {}]
  %s7 = inlined_call_operand.hbm [shape: f32[8,32], index: 7, kind: output, shape index: {0}]
  %s8 = inlined_call_operand.hbm [shape: s32[1], index: 8, kind: output, shape index: {1}]
  %9 = xla_tuple %s7, %s8
  %s10 = sld [smem:[#allocation0]]
  $region46: #{tpu_custom_call.1} parent=0
    _
  %s12 = ssub.s32 1, %s10
  %s13 = scalar_select 0, %s12, %s10
  %s15 = sshll.u32 %s0, 4
  %s16 = int_to_ptr.vmem [resolvable:$true] %s15
  %18 = dma.vmem_to_smem %s16, 16, [#allocation3], [#allocation2]
  %20 = dma.done [#allocation2], 16
  %21 = sfence
  $region1: #{tpu_custom_call.1} parent=0
    #allocation4 [shape = 'u8[131072]{0}', space=vmem, size = 0x20000, scoped, tag = 'input window, operand 2, single buffered']
    #allocation5 [shape = 's32[1]{0}', space=sflag, size = 0x4, scoped, tag = 'scoped memory for tpu_custom_call.1']
    #allocation6 [shape = 's32[1]{0}', space=sflag, size = 0x4, scoped, tag = 'scoped memory for tpu_custom_call.1']
    #allocation7 [shape = 's32[1]{0}', space=sflag, size = 0x4, scoped, tag = 'scoped memory for tpu_custom_call.1']
    #allocation8 [shape = 'u8[4096]{0}', space=vmem, size = 0x1000, scoped, tag = 'output window, operand 0, single buffered']
    #allocation9 [shape = 'u8[512]{0}', space=smem, size = 0x200, scoped, tag = 'output window, operand 1, single buffered']
    %22 = vsyncpa [#allocation5], 0
    %23 = vsyncpa [#allocation6], 0
    %24 = vsyncpa [#allocation7], 0
    // Predicated region
    $region2: #{tpu_custom_call.1} parent=1 // pred_check
      _
    $region3: #{tpu_custom_call.1} parent=1 // pred_check_branch
      %26 = sbr.rel (0) target = $region5
    $region4: #{tpu_custom_call.1} parent=1 // pred_region
      _
    $region5: #{tpu_custom_call.1} parent=1 // pred_fallthru
      _
    // Predicated region
    $region6: #{tpu_custom_call.1} parent=1 // pred_check
      _
    $region7: #{tpu_custom_call.1} parent=1 // pred_check_branch
      %28 = sbr.rel (0) target = $region9
    $region8: #{tpu_custom_call.1} parent=1 // pred_region
      %30 = vsyncadd [#allocation5], 0
      %s31 = sshll.u32 %s2, 4
      %s32 = int_to_ptr.hbm [resolvable:$true] %s31
      %s33 = sshll.u32 [#allocation4], 4
      %s34 = int_to_ptr.vmem [resolvable:$true] %s33
      %39 = dma.hbm_to_vmem [thread:$0]  %s32, 4096, %s34, [#allocation5], 128, 128, 8
    $region9: #{tpu_custom_call.1} parent=1 // pred_fallthru
      _
    // Predicated region
    $region10: #{tpu_custom_call.1} parent=1 // pred_check
      _
    $region11: #{tpu_custom_call.1} parent=1 // pred_check_branch
      %41 = sbr.rel (0) target = $region13
    $region12: #{tpu_custom_call.1} parent=1 // pred_region
      _
    $region13: #{tpu_custom_call.1} parent=1 // pred_fallthru
      _
    // Predicated region
    $region14: #{tpu_custom_call.1} parent=1 // pred_check
      _
    $region15: #{tpu_custom_call.1} parent=1 // pred_check_branch
      %43 = sbr.rel (0) target = $region17
    $region16: #{tpu_custom_call.1} parent=1 // pred_region
      _
    $region17: #{tpu_custom_call.1} parent=1 // pred_fallthru
      _
    // Predicated region
    $region18: #{tpu_custom_call.1} parent=1 // pred_check
      _
    $region19: #{tpu_custom_call.1} parent=1 // pred_check_branch
      %45 = sbr.rel (0) target = $region21
    $region20: #{tpu_custom_call.1} parent=1 // pred_region
      _
    $region21: #{tpu_custom_call.1} parent=1 // pred_fallthru
      _
    // Predicated region
    $region22: #{tpu_custom_call.1} parent=1 // pred_check
      _
    $region23: #{tpu_custom_call.1} parent=1 // pred_check_branch
      %47 = sbr.rel (0) target = $region25
    $region24: #{tpu_custom_call.1} parent=1 // pred_region
      _
    $region25: #{tpu_custom_call.1} parent=1 // pred_fallthru
      _
    // Predicated region
    $region26: #{tpu_custom_call.1} parent=1 // pred_check
      _
    $region27: #{tpu_custom_call.1} parent=1 // pred_check_branch
      %49 = sbr.rel (0) target = $region29
    $region28: #{tpu_custom_call.1} parent=1 // pred_region
      %51 = dma.done [#allocation5], 4096
    $region29: #{tpu_custom_call.1} parent=1 // pred_fallthru
      _
    %s52 = sld [smem:[#allocation3]]
    %s53 = sld [smem:[#allocation3 + $0x1]]
    %v54 = vld [vmem:[%s4] sm:$0xff]
    %vm55 = vcmp.gt.f32.partialorder %v54, 0.0
    %v56 = vlaneseq
    %v57 = vshrl.u32 %v56, 7
    %v58 = vlaneseq
    %v59 = vand.u32 %v58, 127
    %vm60 = vcmp.eq.s32.totalorder %v57, %v59
    %vm61 = vmxor %vm60, 1
    %vm62 = vmand %vm55, %vm61
    %v63 = vld [vmem:[%s5] sm:$0xff]
    %v64 = vld [vmem:[%s5 + $0x8] sm:$0xff]
    %v65 = vld [vmem:[%s5 + $0x10] sm:$0xff]
    %v66 = vld [vmem:[%s5 + $0x18] sm:$0xff]
    %v67 = vld [vmem:[%s6] sm:$0x1]
    %v68 = vld [vmem:[#allocation4] sm:$0xff]
    %v69 = vld [vmem:[#allocation4 + $0x8] sm:$0xff]
    %v70 = vld [vmem:[#allocation4 + $0x10] sm:$0xff]
    %v71 = vld [vmem:[#allocation4 + $0x18] sm:$0xff]
    %v72 = vld [vmem:[#allocation4 + $0x20] sm:$0xff]
    %v73 = vld [vmem:[#allocation4 + $0x28] sm:$0xff]
    %v74 = vld [vmem:[#allocation4 + $0x30] sm:$0xff]
    %v75 = vld [vmem:[#allocation4 + $0x38] sm:$0xff]
    %v76 = vld [vmem:[#allocation4 + $0x40] sm:$0xff]
    %v77 = vld [vmem:[#allocation4 + $0x48] sm:$0xff]
    %v78 = vld [vmem:[#allocation4 + $0x50] sm:$0xff]
    %v79 = vld [vmem:[#allocation4 + $0x58] sm:$0xff]
    %v80 = vld [vmem:[#allocation4 + $0x60] sm:$0xff]
    %v81 = vld [vmem:[#allocation4 + $0x68] sm:$0xff]
    %v82 = vld [vmem:[#allocation4 + $0x70] sm:$0xff]
    %v83 = vld [vmem:[#allocation4 + $0x78] sm:$0xff]
    %v84 = vld [vmem:[#allocation4 + $0x80] sm:$0xff]
    %v85 = vld [vmem:[#allocation4 + $0x88] sm:$0xff]
    %v86 = vld [vmem:[#allocation4 + $0x90] sm:$0xff]
    %v87 = vld [vmem:[#allocation4 + $0x98] sm:$0xff]
    %v88 = vld [vmem:[#allocation4 + $0xa0] sm:$0xff]
    %v89 = vld [vmem:[#allocation4 + $0xa8] sm:$0xff]
    %v90 = vld [vmem:[#allocation4 + $0xb0] sm:$0xff]
    %v91 = vld [vmem:[#allocation4 + $0xb8] sm:$0xff]
    %v92 = vld [vmem:[#allocation4 + $0xc0] sm:$0xff]
    %v93 = vld [vmem:[#allocation4 + $0xc8] sm:$0xff]
    %v94 = vld [vmem:[#allocation4 + $0xd0] sm:$0xff]
    %v95 = vld [vmem:[#allocation4 + $0xd8] sm:$0xff]
    %v96 = vld [vmem:[#allocation4 + $0xe0] sm:$0xff]
    %v97 = vld [vmem:[#allocation4 + $0xe8] sm:$0xff]
    %v98 = vld [vmem:[#allocation4 + $0xf0] sm:$0xff]
    %v99 = vld [vmem:[#allocation4 + $0xf8] sm:$0xff]
    %v100 = vld [vmem:[%s3] sm:$0xff]
    %v101 = vld [vmem:[%s1] sm:$0xff]
    %vm102 = vcmask 261120
    %v104 = vsel %vm102, %v101, 0
    %106 = vmatpush.msra.mxu0 0.0
    %107 = vmatpush.msra.mxu0 0.0
    %108 = vmatpush.msra.mxu0 0.0
    %109 = vmatpush.msra.mxu0 0.0
    %110 = vmatpush.msra.mxu0 0.0
    %111 = vmatpush.msra.mxu0 0.0
    %112 = vmatpush.msra.mxu0 0.0
    %113 = vmatpush.msra.mxu0 0.0
    %114 = vmatpush.msra.mxu0 0.0
    %115 = vmatpush.msra.mxu0 0.0
    %116 = vmatpush.msra.mxu0 0.0
    %117 = vmatpush.msra.mxu0 0.0
    %118 = vmatpush.msra.mxu0 %v66
    %119 = vmatpush.msra.mxu0 %v65
    %120 = vmatpush.msra.mxu0 %v64
    %121 = vmatpush.msra.mxu0 %v63
    %122 = vmatmul.f32.gmra.mxu0 %v104
    %v123 = vpop.f32.mrf.mxu0
    %v124 = vadd.f32 0.0, %v123
    %125 = vdwg.mxu0
    %v127 = vsel %vm102, %v67, 0
    %129 = vmatpush.xpose.msra.mxu0 0.0
    %130 = vmatpush.xpose.msra.mxu0 0.0
    %131 = vmatpush.xpose.msra.mxu0 0.0
    %132 = vmatpush.xpose.msra.mxu0 0.0
    %133 = vmatpush.xpose.msra.mxu0 0.0
    %134 = vmatpush.xpose.msra.mxu0 0.0
    %135 = vmatpush.xpose.msra.mxu0 0.0
    %136 = vmatpush.xpose.msra.mxu0 0.0
    %137 = vmatpush.xpose.msra.mxu0 0.0
    %138 = vmatpush.xpose.msra.mxu0 0.0
    %139 = vmatpush.xpose.msra.mxu0 0.0
    %140 = vmatpush.xpose.msra.mxu0 0.0
    %141 = vmatpush.xpose.msra.mxu0 0.0
    %142 = vmatpush.xpose.msra.mxu0 0.0
    %143 = vmatpush.xpose.msra.mxu0 0.0
    %144 = vmatpush.xpose.msra.mxu0 %v104
    %145 = vmatmul.f32.gmra.mxu0 %v127
    %v146 = vpop.f32.mrf.mxu0
    %v147 = vadd.f32 0.0, %v146
    %148 = vdwg.mxu0
    %150 = vset.pattern.permute.xlu0 0
    %151 = vperm.xlu0 %150, %v124
    %v152 = vpop.permute.xlu0 %151
    %v154 = vperm.slane %v147, 0
    %v155 = vadd.f32 %v152, %v154
    %vm156 = vcmp.gt.f32.partialorder %v155, 0.0
    %v157 = vmul.f32 %v155, 0.2
    %v158 = vsel %vm156, %v155, %v157
    %v159 = vsel %vm55, %v158, -1e+30
    %vm160 = vcmask 64512
    %v161 = vsel %vm160, %v159, -inf
    %162 = vmax.xlane.f32.xlu0 %v161
    %v163 = vpop.xlane.xlu0 %162
    %v164 = vsub.f32 %v159, %v163
    %v165 = vmul.f32 %v164, 1.442695
    %v166 = vpow.pop %v165
    %v167 = vsel %vm160, %v166, 0.0
    %168 = vadd.xlane.f32.xlu0 %v167
    %v169 = vpop.xlane.xlu0 %168
    %v170 = vrcp.pop %v169
    %v171 = vmul.f32 %v166, %v170
    %vm172 = vcmp.ge.f32.partialorder %v171, 0.0
    %vm173 = vmor %vm172, %vm60
    %v174 = vsel %vm173, %v171, 0.0
    %vm175 = vmand %vm173, %vm62
    %v176 = vsel %vm175, 1.0, 0.0
    %v177 = vrot.slane %v101, 1
    %v178 = vrot.slane %v101, 2
    %v179 = vrot.slane %v101, 3
    %v180 = vrot.slane %v101, 4
    %v181 = vrot.slane %v101, 5
    %v182 = vrot.slane %v101, 6
    %v183 = vrot.slane %v101, 7
    %v184 = vperm.slane %v101, 0
    %v185 = vperm.slane %v177, 0
    %v186 = vperm.slane %v178, 0
    %v187 = vperm.slane %v179, 0
    %v188 = vperm.slane %v180, 0
    %v189 = vperm.slane %v181, 0
    %v190 = vperm.slane %v182, 0
    %v191 = vperm.slane %v183, 0
    %v200 = vmul.f32 %v68, %v184
    %v201 = vmul.f32 %v69, %v184
    %v202 = vmul.f32 %v70, %v184
    %v203 = vmul.f32 %v71, %v184
    %v204 = vmul.f32 %v72, %v185
    %v205 = vmul.f32 %v73, %v185
    %v206 = vmul.f32 %v74, %v185
    %v207 = vmul.f32 %v75, %v185
    %v208 = vmul.f32 %v76, %v186
    %v209 = vmul.f32 %v77, %v186
    %v210 = vmul.f32 %v78, %v186
    %v211 = vmul.f32 %v79, %v186
    %v212 = vmul.f32 %v80, %v187
    %v213 = vmul.f32 %v81, %v187
    %v214 = vmul.f32 %v82, %v187
    %v215 = vmul.f32 %v83, %v187
    %v216 = vmul.f32 %v84, %v188
    %v217 = vmul.f32 %v85, %v188
    %v218 = vmul.f32 %v86, %v188
    %v219 = vmul.f32 %v87, %v188
    %v220 = vmul.f32 %v88, %v189
    %v221 = vmul.f32 %v89, %v189
    %v222 = vmul.f32 %v90, %v189
    %v223 = vmul.f32 %v91, %v189
    %v224 = vmul.f32 %v92, %v190
    %v225 = vmul.f32 %v93, %v190
    %v226 = vmul.f32 %v94, %v190
    %v227 = vmul.f32 %v95, %v190
    %v228 = vmul.f32 %v96, %v191
    %v229 = vmul.f32 %v97, %v191
    %v230 = vmul.f32 %v98, %v191
    %v231 = vmul.f32 %v99, %v191
    %v232 = vsel %vm102, %v200, 0.0
    %233 = vadd.xlane.f32.xlu0 %v232
    %v234 = vpop.xlane.xlu0 %233
    %v235 = vsel %vm102, %v201, 0.0
    %236 = vadd.xlane.f32.xlu0 %v235
    %v237 = vpop.xlane.xlu0 %236
    %v238 = vsel %vm102, %v202, 0.0
    %239 = vadd.xlane.f32.xlu0 %v238
    %v240 = vpop.xlane.xlu0 %239
    %v241 = vsel %vm102, %v203, 0.0
    %242 = vadd.xlane.f32.xlu0 %v241
    %v243 = vpop.xlane.xlu0 %242
    %v244 = vsel %vm102, %v204, 0.0
    %245 = vadd.xlane.f32.xlu0 %v244
    %v246 = vpop.xlane.xlu0 %245
    %v247 = vsel %vm102, %v205, 0.0
    %248 = vadd.xlane.f32.xlu0 %v247
    %v249 = vpop.xlane.xlu0 %248
    %v250 = vsel %vm102, %v206, 0.0
    %251 = vadd.xlane.f32.xlu0 %v250
    %v252 = vpop.xlane.xlu0 %251
    %v253 = vsel %vm102, %v207, 0.0
    %254 = vadd.xlane.f32.xlu0 %v253
    %v255 = vpop.xlane.xlu0 %254
    %v256 = vsel %vm102, %v208, 0.0
    %257 = vadd.xlane.f32.xlu0 %v256
    %v258 = vpop.xlane.xlu0 %257
    %v259 = vsel %vm102, %v209, 0.0
    %260 = vadd.xlane.f32.xlu0 %v259
    %v261 = vpop.xlane.xlu0 %260
    %v262 = vsel %vm102, %v210, 0.0
    %263 = vadd.xlane.f32.xlu0 %v262
    %v264 = vpop.xlane.xlu0 %263
    %v265 = vsel %vm102, %v211, 0.0
    %266 = vadd.xlane.f32.xlu0 %v265
    %v267 = vpop.xlane.xlu0 %266
    %v268 = vsel %vm102, %v212, 0.0
    %269 = vadd.xlane.f32.xlu0 %v268
    %v270 = vpop.xlane.xlu0 %269
    %v271 = vsel %vm102, %v213, 0.0
    %272 = vadd.xlane.f32.xlu0 %v271
    %v273 = vpop.xlane.xlu0 %272
    %v274 = vsel %vm102, %v214, 0.0
    %275 = vadd.xlane.f32.xlu0 %v274
    %v276 = vpop.xlane.xlu0 %275
    %v277 = vsel %vm102, %v215, 0.0
    %278 = vadd.xlane.f32.xlu0 %v277
    %v279 = vpop.xlane.xlu0 %278
    %v280 = vsel %vm102, %v216, 0.0
    %281 = vadd.xlane.f32.xlu0 %v280
    %v282 = vpop.xlane.xlu0 %281
    %v283 = vsel %vm102, %v217, 0.0
    %284 = vadd.xlane.f32.xlu0 %v283
    %v285 = vpop.xlane.xlu0 %284
    %v286 = vsel %vm102, %v218, 0.0
    %287 = vadd.xlane.f32.xlu0 %v286
    %v288 = vpop.xlane.xlu0 %287
    %v289 = vsel %vm102, %v219, 0.0
    %290 = vadd.xlane.f32.xlu0 %v289
    %v291 = vpop.xlane.xlu0 %290
    %v292 = vsel %vm102, %v220, 0.0
    %293 = vadd.xlane.f32.xlu0 %v292
    %v294 = vpop.xlane.xlu0 %293
    %v295 = vsel %vm102, %v221, 0.0
    %296 = vadd.xlane.f32.xlu0 %v295
    %v297 = vpop.xlane.xlu0 %296
    %v298 = vsel %vm102, %v222, 0.0
    %299 = vadd.xlane.f32.xlu0 %v298
    %v300 = vpop.xlane.xlu0 %299
    %v301 = vsel %vm102, %v223, 0.0
    %302 = vadd.xlane.f32.xlu0 %v301
    %v303 = vpop.xlane.xlu0 %302
    %v304 = vsel %vm102, %v224, 0.0
    %305 = vadd.xlane.f32.xlu0 %v304
    %v306 = vpop.xlane.xlu0 %305
    %v307 = vsel %vm102, %v225, 0.0
    %308 = vadd.xlane.f32.xlu0 %v307
    %v309 = vpop.xlane.xlu0 %308
    %v310 = vsel %vm102, %v226, 0.0
    %311 = vadd.xlane.f32.xlu0 %v310
    %v312 = vpop.xlane.xlu0 %311
    %v313 = vsel %vm102, %v227, 0.0
    %314 = vadd.xlane.f32.xlu0 %v313
    %v315 = vpop.xlane.xlu0 %314
    %v316 = vsel %vm102, %v228, 0.0
    %317 = vadd.xlane.f32.xlu0 %v316
    %v318 = vpop.xlane.xlu0 %317
    %v319 = vsel %vm102, %v229, 0.0
    %320 = vadd.xlane.f32.xlu0 %v319
    %v321 = vpop.xlane.xlu0 %320
    %v322 = vsel %vm102, %v230, 0.0
    %323 = vadd.xlane.f32.xlu0 %v322
    %v324 = vpop.xlane.xlu0 %323
    %v325 = vsel %vm102, %v231, 0.0
    %326 = vadd.xlane.f32.xlu0 %v325
    %v327 = vpop.xlane.xlu0 %326
    %v328 = vmul.f32 %v234, 2.0
    %v329 = vmul.f32 %v237, 2.0
    %v330 = vmul.f32 %v240, 2.0
    %v331 = vmul.f32 %v243, 2.0
    %v332 = vmul.f32 %v246, 2.0
    %v333 = vmul.f32 %v249, 2.0
    %v334 = vmul.f32 %v252, 2.0
    %v335 = vmul.f32 %v255, 2.0
    %v336 = vmul.f32 %v258, 2.0
    %v337 = vmul.f32 %v261, 2.0
    %v338 = vmul.f32 %v264, 2.0
    %v339 = vmul.f32 %v267, 2.0
    %v340 = vmul.f32 %v270, 2.0
    %v341 = vmul.f32 %v273, 2.0
    %v342 = vmul.f32 %v276, 2.0
    %v343 = vmul.f32 %v279, 2.0
    %v344 = vmul.f32 %v282, 2.0
    %v345 = vmul.f32 %v285, 2.0
    %v346 = vmul.f32 %v288, 2.0
    %v347 = vmul.f32 %v291, 2.0
    %v348 = vmul.f32 %v294, 2.0
    %v349 = vmul.f32 %v297, 2.0
    %v350 = vmul.f32 %v300, 2.0
    %v351 = vmul.f32 %v303, 2.0
    %v352 = vmul.f32 %v306, 2.0
    %v353 = vmul.f32 %v309, 2.0
    %v354 = vmul.f32 %v312, 2.0
    %v355 = vmul.f32 %v315, 2.0
    %v356 = vmul.f32 %v318, 2.0
    %v357 = vmul.f32 %v321, 2.0
    %v358 = vmul.f32 %v324, 2.0
    %v359 = vmul.f32 %v327, 2.0
    %v361 = vperm.slane %v100, 0
    %v362 = vlaneseq
    %v363 = vshrl.u32 %v362, 7
    %365 = vset.pattern.permute.xlu0 %v363
    %366 = vperm.xlu0 %365, %v361
    %v367 = vpop.permute.xlu0 %366
    %v368 = vlaneseq
    %v369 = vshrl.u32 %v368, 7
    %v370 = vadd.s32 %v369, 8
    %371 = vset.pattern.permute.xlu0 %v370
    %372 = vperm.xlu0 %371, %v361
    %v373 = vpop.permute.xlu0 %372
    %v374 = vlaneseq
    %v375 = vshrl.u32 %v374, 7
    %v376 = vadd.s32 %v375, 16
    %377 = vset.pattern.permute.xlu0 %v376
    %378 = vperm.xlu0 %377, %v361
    %v379 = vpop.permute.xlu0 %378
    %v380 = vlaneseq
    %v381 = vshrl.u32 %v380, 7
    %v382 = vadd.s32 %v381, 24
    %383 = vset.pattern.permute.xlu0 %v382
    %384 = vperm.xlu0 %383, %v361
    %v385 = vpop.permute.xlu0 %384
    %v386 = vperm.slane %v100, 1
    %v387 = vlaneseq
    %v388 = vshrl.u32 %v387, 7
    %390 = vset.pattern.permute.xlu0 %v388
    %391 = vperm.xlu0 %390, %v386
    %v392 = vpop.permute.xlu0 %391
    %v393 = vlaneseq
    %v394 = vshrl.u32 %v393, 7
    %v395 = vadd.s32 %v394, 8
    %396 = vset.pattern.permute.xlu0 %v395
    %397 = vperm.xlu0 %396, %v386
    %v398 = vpop.permute.xlu0 %397
    %v399 = vlaneseq
    %v400 = vshrl.u32 %v399, 7
    %v401 = vadd.s32 %v400, 16
    %402 = vset.pattern.permute.xlu0 %v401
    %403 = vperm.xlu0 %402, %v386
    %v404 = vpop.permute.xlu0 %403
    %v405 = vlaneseq
    %v406 = vshrl.u32 %v405, 7
    %v407 = vadd.s32 %v406, 24
    %408 = vset.pattern.permute.xlu0 %v407
    %409 = vperm.xlu0 %408, %v386
    %v410 = vpop.permute.xlu0 %409
    %v411 = vperm.slane %v100, 2
    %v412 = vlaneseq
    %v413 = vshrl.u32 %v412, 7
    %415 = vset.pattern.permute.xlu0 %v413
    %416 = vperm.xlu0 %415, %v411
    %v417 = vpop.permute.xlu0 %416
    %v418 = vlaneseq
    %v419 = vshrl.u32 %v418, 7
    %v420 = vadd.s32 %v419, 8
    %421 = vset.pattern.permute.xlu0 %v420
    %422 = vperm.xlu0 %421, %v411
    %v423 = vpop.permute.xlu0 %422
    %v424 = vlaneseq
    %v425 = vshrl.u32 %v424, 7
    %v426 = vadd.s32 %v425, 16
    %427 = vset.pattern.permute.xlu0 %v426
    %428 = vperm.xlu0 %427, %v411
    %v429 = vpop.permute.xlu0 %428
    %v430 = vlaneseq
    %v431 = vshrl.u32 %v430, 7
    %v432 = vadd.s32 %v431, 24
    %433 = vset.pattern.permute.xlu0 %v432
    %434 = vperm.xlu0 %433, %v411
    %v435 = vpop.permute.xlu0 %434
    %v436 = vperm.slane %v100, 3
    %v437 = vlaneseq
    %v438 = vshrl.u32 %v437, 7
    %440 = vset.pattern.permute.xlu0 %v438
    %441 = vperm.xlu0 %440, %v436
    %v442 = vpop.permute.xlu0 %441
    %v443 = vlaneseq
    %v444 = vshrl.u32 %v443, 7
    %v445 = vadd.s32 %v444, 8
    %446 = vset.pattern.permute.xlu0 %v445
    %447 = vperm.xlu0 %446, %v436
    %v448 = vpop.permute.xlu0 %447
    %v449 = vlaneseq
    %v450 = vshrl.u32 %v449, 7
    %v451 = vadd.s32 %v450, 16
    %452 = vset.pattern.permute.xlu0 %v451
    %453 = vperm.xlu0 %452, %v436
    %v454 = vpop.permute.xlu0 %453
    %v455 = vlaneseq
    %v456 = vshrl.u32 %v455, 7
    %v457 = vadd.s32 %v456, 24
    %458 = vset.pattern.permute.xlu0 %v457
    %459 = vperm.xlu0 %458, %v436
    %v460 = vpop.permute.xlu0 %459
    %v461 = vperm.slane %v100, 4
    %v462 = vlaneseq
    %v463 = vshrl.u32 %v462, 7
    %465 = vset.pattern.permute.xlu0 %v463
    %466 = vperm.xlu0 %465, %v461
    %v467 = vpop.permute.xlu0 %466
    %v468 = vlaneseq
    %v469 = vshrl.u32 %v468, 7
    %v470 = vadd.s32 %v469, 8
    %471 = vset.pattern.permute.xlu0 %v470
    %472 = vperm.xlu0 %471, %v461
    %v473 = vpop.permute.xlu0 %472
    %v474 = vlaneseq
    %v475 = vshrl.u32 %v474, 7
    %v476 = vadd.s32 %v475, 16
    %477 = vset.pattern.permute.xlu0 %v476
    %478 = vperm.xlu0 %477, %v461
    %v479 = vpop.permute.xlu0 %478
    %v480 = vlaneseq
    %v481 = vshrl.u32 %v480, 7
    %v482 = vadd.s32 %v481, 24
    %483 = vset.pattern.permute.xlu0 %v482
    %484 = vperm.xlu0 %483, %v461
    %v485 = vpop.permute.xlu0 %484
    %v486 = vperm.slane %v100, 5
    %v487 = vlaneseq
    %v488 = vshrl.u32 %v487, 7
    %490 = vset.pattern.permute.xlu0 %v488
    %491 = vperm.xlu0 %490, %v486
    %v492 = vpop.permute.xlu0 %491
    %v493 = vlaneseq
    %v494 = vshrl.u32 %v493, 7
    %v495 = vadd.s32 %v494, 8
    %496 = vset.pattern.permute.xlu0 %v495
    %497 = vperm.xlu0 %496, %v486
    %v498 = vpop.permute.xlu0 %497
    %v499 = vlaneseq
    %v500 = vshrl.u32 %v499, 7
    %v501 = vadd.s32 %v500, 16
    %502 = vset.pattern.permute.xlu0 %v501
    %503 = vperm.xlu0 %502, %v486
    %v504 = vpop.permute.xlu0 %503
    %v505 = vlaneseq
    %v506 = vshrl.u32 %v505, 7
    %v507 = vadd.s32 %v506, 24
    %508 = vset.pattern.permute.xlu0 %v507
    %509 = vperm.xlu0 %508, %v486
    %v510 = vpop.permute.xlu0 %509
    %v511 = vperm.slane %v100, 6
    %v512 = vlaneseq
    %v513 = vshrl.u32 %v512, 7
    %515 = vset.pattern.permute.xlu0 %v513
    %516 = vperm.xlu0 %515, %v511
    %v517 = vpop.permute.xlu0 %516
    %v518 = vlaneseq
    %v519 = vshrl.u32 %v518, 7
    %v520 = vadd.s32 %v519, 8
    %521 = vset.pattern.permute.xlu0 %v520
    %522 = vperm.xlu0 %521, %v511
    %v523 = vpop.permute.xlu0 %522
    %v524 = vlaneseq
    %v525 = vshrl.u32 %v524, 7
    %v526 = vadd.s32 %v525, 16
    %527 = vset.pattern.permute.xlu0 %v526
    %528 = vperm.xlu0 %527, %v511
    %v529 = vpop.permute.xlu0 %528
    %v530 = vlaneseq
    %v531 = vshrl.u32 %v530, 7
    %v532 = vadd.s32 %v531, 24
    %533 = vset.pattern.permute.xlu0 %v532
    %534 = vperm.xlu0 %533, %v511
    %v535 = vpop.permute.xlu0 %534
    %v536 = vperm.slane %v100, 7
    %v537 = vlaneseq
    %v538 = vshrl.u32 %v537, 7
    %540 = vset.pattern.permute.xlu0 %v538
    %541 = vperm.xlu0 %540, %v536
    %v542 = vpop.permute.xlu0 %541
    %v543 = vlaneseq
    %v544 = vshrl.u32 %v543, 7
    %v545 = vadd.s32 %v544, 8
    %546 = vset.pattern.permute.xlu0 %v545
    %547 = vperm.xlu0 %546, %v536
    %v548 = vpop.permute.xlu0 %547
    %v549 = vlaneseq
    %v550 = vshrl.u32 %v549, 7
    %v551 = vadd.s32 %v550, 16
    %552 = vset.pattern.permute.xlu0 %v551
    %553 = vperm.xlu0 %552, %v536
    %v554 = vpop.permute.xlu0 %553
    %v555 = vlaneseq
    %v556 = vshrl.u32 %v555, 7
    %v557 = vadd.s32 %v556, 24
    %558 = vset.pattern.permute.xlu0 %v557
    %559 = vperm.xlu0 %558, %v536
    %v560 = vpop.permute.xlu0 %559
    %v593 = vadd.f32 %v328, %v367
    %v594 = vadd.f32 %v329, %v373
    %v595 = vadd.f32 %v330, %v379
    %v596 = vadd.f32 %v331, %v385
    %v597 = vadd.f32 %v332, %v392
    %v598 = vadd.f32 %v333, %v398
    %v599 = vadd.f32 %v334, %v404
    %v600 = vadd.f32 %v335, %v410
    %v601 = vadd.f32 %v336, %v417
    %v602 = vadd.f32 %v337, %v423
    %v603 = vadd.f32 %v338, %v429
    %v604 = vadd.f32 %v339, %v435
    %v605 = vadd.f32 %v340, %v442
    %v606 = vadd.f32 %v341, %v448
    %v607 = vadd.f32 %v342, %v454
    %v608 = vadd.f32 %v343, %v460
    %v609 = vadd.f32 %v344, %v467
    %v610 = vadd.f32 %v345, %v473
    %v611 = vadd.f32 %v346, %v479
    %v612 = vadd.f32 %v347, %v485
    %v613 = vadd.f32 %v348, %v492
    %v614 = vadd.f32 %v349, %v498
    %v615 = vadd.f32 %v350, %v504
    %v616 = vadd.f32 %v351, %v510
    %v617 = vadd.f32 %v352, %v517
    %v618 = vadd.f32 %v353, %v523
    %v619 = vadd.f32 %v354, %v529
    %v620 = vadd.f32 %v355, %v535
    %v621 = vadd.f32 %v356, %v542
    %v622 = vadd.f32 %v357, %v548
    %v623 = vadd.f32 %v358, %v554
    %v624 = vadd.f32 %v359, %v560
    %v626 = vsel %vm160, %v174, 0
    %628 = vmatpush.msra.mxu0 0.0
    %629 = vmatpush.msra.mxu0 0.0
    %630 = vmatpush.msra.mxu0 0.0
    %631 = vmatpush.msra.mxu0 0.0
    %632 = vmatpush.msra.mxu0 0.0
    %633 = vmatpush.msra.mxu0 0.0
    %634 = vmatpush.msra.mxu0 0.0
    %635 = vmatpush.msra.mxu0 0.0
    %636 = vmatpush.msra.mxu0 0.0
    %637 = vmatpush.msra.mxu0 0.0
    %638 = vmatpush.msra.mxu0 0.0
    %639 = vmatpush.msra.mxu0 0.0
    %640 = vmatpush.msra.mxu0 0.0
    %641 = vmatpush.msra.mxu0 0.0
    %642 = vmatpush.msra.mxu0 0.0
    %643 = vmatpush.msra.mxu0 %v101
    %644 = vmatmul.f32.gmra.mxu0 %v626
    %v645 = vpop.f32.mrf.mxu0
    %v646 = vadd.f32 0.0, %v645
    %647 = vdwg.mxu0
    %v648 = vstv %s52
    %v649 = vmul.f32 %v648, %v593
    %v650 = vmul.f32 %v648, %v594
    %v651 = vmul.f32 %v648, %v595
    %v652 = vmul.f32 %v648, %v596
    %v653 = vmul.f32 %v648, %v597
    %v654 = vmul.f32 %v648, %v598
    %v655 = vmul.f32 %v648, %v599
    %v656 = vmul.f32 %v648, %v600
    %v657 = vmul.f32 %v648, %v601
    %v658 = vmul.f32 %v648, %v602
    %v659 = vmul.f32 %v648, %v603
    %v660 = vmul.f32 %v648, %v604
    %v661 = vmul.f32 %v648, %v605
    %v662 = vmul.f32 %v648, %v606
    %v663 = vmul.f32 %v648, %v607
    %v664 = vmul.f32 %v648, %v608
    %v665 = vmul.f32 %v648, %v609
    %v666 = vmul.f32 %v648, %v610
    %v667 = vmul.f32 %v648, %v611
    %v668 = vmul.f32 %v648, %v612
    %v669 = vmul.f32 %v648, %v613
    %v670 = vmul.f32 %v648, %v614
    %v671 = vmul.f32 %v648, %v615
    %v672 = vmul.f32 %v648, %v616
    %v673 = vmul.f32 %v648, %v617
    %v674 = vmul.f32 %v648, %v618
    %v675 = vmul.f32 %v648, %v619
    %v676 = vmul.f32 %v648, %v620
    %v677 = vmul.f32 %v648, %v621
    %v678 = vmul.f32 %v648, %v622
    %v679 = vmul.f32 %v648, %v623
    %v680 = vmul.f32 %v648, %v624
    %713 = vset.pattern.permute.xlu0 0
    %714 = vperm.xlu0 %713, %v649
    %v715 = vpop.permute.xlu0 %714
    %716 = vset.pattern.permute.xlu0 0
    %717 = vperm.xlu0 %716, %v650
    %v718 = vpop.permute.xlu0 %717
    %719 = vset.pattern.permute.xlu0 0
    %720 = vperm.xlu0 %719, %v651
    %v721 = vpop.permute.xlu0 %720
    %722 = vset.pattern.permute.xlu0 0
    %723 = vperm.xlu0 %722, %v652
    %v724 = vpop.permute.xlu0 %723
    %725 = vset.pattern.permute.xlu0 0
    %726 = vperm.xlu0 %725, %v653
    %v727 = vpop.permute.xlu0 %726
    %728 = vset.pattern.permute.xlu0 0
    %729 = vperm.xlu0 %728, %v654
    %v730 = vpop.permute.xlu0 %729
    %731 = vset.pattern.permute.xlu0 0
    %732 = vperm.xlu0 %731, %v655
    %v733 = vpop.permute.xlu0 %732
    %734 = vset.pattern.permute.xlu0 0
    %735 = vperm.xlu0 %734, %v656
    %v736 = vpop.permute.xlu0 %735
    %737 = vset.pattern.permute.xlu0 0
    %738 = vperm.xlu0 %737, %v657
    %v739 = vpop.permute.xlu0 %738
    %740 = vset.pattern.permute.xlu0 0
    %741 = vperm.xlu0 %740, %v658
    %v742 = vpop.permute.xlu0 %741
    %743 = vset.pattern.permute.xlu0 0
    %744 = vperm.xlu0 %743, %v659
    %v745 = vpop.permute.xlu0 %744
    %746 = vset.pattern.permute.xlu0 0
    %747 = vperm.xlu0 %746, %v660
    %v748 = vpop.permute.xlu0 %747
    %749 = vset.pattern.permute.xlu0 0
    %750 = vperm.xlu0 %749, %v661
    %v751 = vpop.permute.xlu0 %750
    %752 = vset.pattern.permute.xlu0 0
    %753 = vperm.xlu0 %752, %v662
    %v754 = vpop.permute.xlu0 %753
    %755 = vset.pattern.permute.xlu0 0
    %756 = vperm.xlu0 %755, %v663
    %v757 = vpop.permute.xlu0 %756
    %758 = vset.pattern.permute.xlu0 0
    %759 = vperm.xlu0 %758, %v664
    %v760 = vpop.permute.xlu0 %759
    %761 = vset.pattern.permute.xlu0 0
    %762 = vperm.xlu0 %761, %v665
    %v763 = vpop.permute.xlu0 %762
    %764 = vset.pattern.permute.xlu0 0
    %765 = vperm.xlu0 %764, %v666
    %v766 = vpop.permute.xlu0 %765
    %767 = vset.pattern.permute.xlu0 0
    %768 = vperm.xlu0 %767, %v667
    %v769 = vpop.permute.xlu0 %768
    %770 = vset.pattern.permute.xlu0 0
    %771 = vperm.xlu0 %770, %v668
    %v772 = vpop.permute.xlu0 %771
    %773 = vset.pattern.permute.xlu0 0
    %774 = vperm.xlu0 %773, %v669
    %v775 = vpop.permute.xlu0 %774
    %776 = vset.pattern.permute.xlu0 0
    %777 = vperm.xlu0 %776, %v670
    %v778 = vpop.permute.xlu0 %777
    %779 = vset.pattern.permute.xlu0 0
    %780 = vperm.xlu0 %779, %v671
    %v781 = vpop.permute.xlu0 %780
    %782 = vset.pattern.permute.xlu0 0
    %783 = vperm.xlu0 %782, %v672
    %v784 = vpop.permute.xlu0 %783
    %785 = vset.pattern.permute.xlu0 0
    %786 = vperm.xlu0 %785, %v673
    %v787 = vpop.permute.xlu0 %786
    %788 = vset.pattern.permute.xlu0 0
    %789 = vperm.xlu0 %788, %v674
    %v790 = vpop.permute.xlu0 %789
    %791 = vset.pattern.permute.xlu0 0
    %792 = vperm.xlu0 %791, %v675
    %v793 = vpop.permute.xlu0 %792
    %794 = vset.pattern.permute.xlu0 0
    %795 = vperm.xlu0 %794, %v676
    %v796 = vpop.permute.xlu0 %795
    %797 = vset.pattern.permute.xlu0 0
    %798 = vperm.xlu0 %797, %v677
    %v799 = vpop.permute.xlu0 %798
    %800 = vset.pattern.permute.xlu0 0
    %801 = vperm.xlu0 %800, %v678
    %v802 = vpop.permute.xlu0 %801
    %803 = vset.pattern.permute.xlu0 0
    %804 = vperm.xlu0 %803, %v679
    %v805 = vpop.permute.xlu0 %804
    %806 = vset.pattern.permute.xlu0 0
    %807 = vperm.xlu0 %806, %v680
    %v808 = vpop.permute.xlu0 %807
    %v809 = vperm.slane %v715, %v59
    %v810 = vadd.s32 %v59, 4294967288
    %v811 = vperm.slane %v718, %v810
    %vm812 = vcmask 130112
    %v813 = vsel %vm812, %v811, %v809
    %v814 = vadd.s32 %v59, 4294967280
    %v815 = vperm.slane %v721, %v814
    %vm816 = vcmask 195712
    %v817 = vsel %vm816, %v815, %v813
    %v818 = vadd.s32 %v59, 4294967272
    %v819 = vperm.slane %v724, %v818
    %vm820 = vcmask 261312
    %v821 = vsel %vm820, %v819, %v817
    %v822 = vperm.slane %v727, %v59
    %v823 = vperm.slane %v730, %v810
    %v824 = vsel %vm812, %v823, %v822
    %v825 = vperm.slane %v733, %v814
    %v826 = vsel %vm816, %v825, %v824
    %v827 = vperm.slane %v736, %v818
    %v828 = vsel %vm820, %v827, %v826
    %v829 = vperm.slane %v739, %v59
    %v830 = vperm.slane %v742, %v810
    %v831 = vsel %vm812, %v830, %v829
    %v832 = vperm.slane %v745, %v814
    %v833 = vsel %vm816, %v832, %v831
    %v834 = vperm.slane %v748, %v818
    %v835 = vsel %vm820, %v834, %v833
    %v836 = vperm.slane %v751, %v59
    %v837 = vperm.slane %v754, %v810
    %v838 = vsel %vm812, %v837, %v836
    %v839 = vperm.slane %v757, %v814
    %v840 = vsel %vm816, %v839, %v838
    %v841 = vperm.slane %v760, %v818
    %v842 = vsel %vm820, %v841, %v840
    %v843 = vperm.slane %v763, %v59
    %v844 = vperm.slane %v766, %v810
    %v845 = vsel %vm812, %v844, %v843
    %v846 = vperm.slane %v769, %v814
    %v847 = vsel %vm816, %v846, %v845
    %v848 = vperm.slane %v772, %v818
    %v849 = vsel %vm820, %v848, %v847
    %v850 = vperm.slane %v775, %v59
    %v851 = vperm.slane %v778, %v810
    %v852 = vsel %vm812, %v851, %v850
    %v853 = vperm.slane %v781, %v814
    %v854 = vsel %vm816, %v853, %v852
    %v855 = vperm.slane %v784, %v818
    %v856 = vsel %vm820, %v855, %v854
    %v857 = vperm.slane %v787, %v59
    %v858 = vperm.slane %v790, %v810
    %v859 = vsel %vm812, %v858, %v857
    %v860 = vperm.slane %v793, %v814
    %v861 = vsel %vm816, %v860, %v859
    %v862 = vperm.slane %v796, %v818
    %v863 = vsel %vm820, %v862, %v861
    %v864 = vperm.slane %v799, %v59
    %v865 = vperm.slane %v802, %v810
    %v866 = vsel %vm812, %v865, %v864
    %v867 = vperm.slane %v805, %v814
    %v868 = vsel %vm816, %v867, %v866
    %v869 = vperm.slane %v808, %v818
    %v870 = vsel %vm820, %v869, %v868
    %vm871 = vcmask 1041409
    %v872 = vsel %vm871, %v828, %v821
    %vm873 = vcmask 1042434
    %v874 = vsel %vm873, %v835, %v872
    %vm875 = vcmask 1043459
    %v876 = vsel %vm875, %v842, %v874
    %vm877 = vcmask 1044484
    %v878 = vsel %vm877, %v849, %v876
    %vm879 = vcmask 1045509
    %v880 = vsel %vm879, %v856, %v878
    %vm881 = vcmask 1046534
    %v882 = vsel %vm881, %v863, %v880
    %vm883 = vcmask 1047559
    %v884 = vsel %vm883, %v870, %v882
    %v886 = vsub.f32 %v646, %v884
    %v887 = vsub.f32 %v886, %v101
    %v889 = vrot.slane %v887, 1
    %v890 = vrot.slane %v887, 2
    %v891 = vrot.slane %v887, 3
    %v892 = vrot.slane %v887, 4
    %v893 = vrot.slane %v887, 5
    %v894 = vrot.slane %v887, 6
    %v895 = vrot.slane %v887, 7
    %v896 = vperm.slane %v887, 0
    %v897 = vperm.slane %v889, 0
    %v898 = vperm.slane %v890, 0
    %v899 = vperm.slane %v891, 0
    %v900 = vperm.slane %v892, 0
    %v901 = vperm.slane %v893, 0
    %v902 = vperm.slane %v894, 0
    %v903 = vperm.slane %v895, 0
    %v912 = vmul.f32 %v68, %v896
    %v913 = vmul.f32 %v69, %v896
    %v914 = vmul.f32 %v70, %v896
    %v915 = vmul.f32 %v71, %v896
    %v916 = vmul.f32 %v72, %v897
    %v917 = vmul.f32 %v73, %v897
    %v918 = vmul.f32 %v74, %v897
    %v919 = vmul.f32 %v75, %v897
    %v920 = vmul.f32 %v76, %v898
    %v921 = vmul.f32 %v77, %v898
    %v922 = vmul.f32 %v78, %v898
    %v923 = vmul.f32 %v79, %v898
    %v924 = vmul.f32 %v80, %v899
    %v925 = vmul.f32 %v81, %v899
    %v926 = vmul.f32 %v82, %v899
    %v927 = vmul.f32 %v83, %v899
    %v928 = vmul.f32 %v84, %v900
    %v929 = vmul.f32 %v85, %v900
    %v930 = vmul.f32 %v86, %v900
    %v931 = vmul.f32 %v87, %v900
    %v932 = vmul.f32 %v88, %v901
    %v933 = vmul.f32 %v89, %v901
    %v934 = vmul.f32 %v90, %v901
    %v935 = vmul.f32 %v91, %v901
    %v936 = vmul.f32 %v92, %v902
    %v937 = vmul.f32 %v93, %v902
    %v938 = vmul.f32 %v94, %v902
    %v939 = vmul.f32 %v95, %v902
    %v940 = vmul.f32 %v96, %v903
    %v941 = vmul.f32 %v97, %v903
    %v942 = vmul.f32 %v98, %v903
    %v943 = vmul.f32 %v99, %v903
    %v944 = vsel %vm102, %v912, 0.0
    %945 = vadd.xlane.f32.xlu0 %v944
    %v946 = vpop.xlane.xlu0 %945
    %v947 = vsel %vm102, %v913, 0.0
    %948 = vadd.xlane.f32.xlu0 %v947
    %v949 = vpop.xlane.xlu0 %948
    %v950 = vsel %vm102, %v914, 0.0
    %951 = vadd.xlane.f32.xlu0 %v950
    %v952 = vpop.xlane.xlu0 %951
    %v953 = vsel %vm102, %v915, 0.0
    %954 = vadd.xlane.f32.xlu0 %v953
    %v955 = vpop.xlane.xlu0 %954
    %v956 = vsel %vm102, %v916, 0.0
    %957 = vadd.xlane.f32.xlu0 %v956
    %v958 = vpop.xlane.xlu0 %957
    %v959 = vsel %vm102, %v917, 0.0
    %960 = vadd.xlane.f32.xlu0 %v959
    %v961 = vpop.xlane.xlu0 %960
    %v962 = vsel %vm102, %v918, 0.0
    %963 = vadd.xlane.f32.xlu0 %v962
    %v964 = vpop.xlane.xlu0 %963
    %v965 = vsel %vm102, %v919, 0.0
    %966 = vadd.xlane.f32.xlu0 %v965
    %v967 = vpop.xlane.xlu0 %966
    %v968 = vsel %vm102, %v920, 0.0
    %969 = vadd.xlane.f32.xlu0 %v968
    %v970 = vpop.xlane.xlu0 %969
    %v971 = vsel %vm102, %v921, 0.0
    %972 = vadd.xlane.f32.xlu0 %v971
    %v973 = vpop.xlane.xlu0 %972
    %v974 = vsel %vm102, %v922, 0.0
    %975 = vadd.xlane.f32.xlu0 %v974
    %v976 = vpop.xlane.xlu0 %975
    %v977 = vsel %vm102, %v923, 0.0
    %978 = vadd.xlane.f32.xlu0 %v977
    %v979 = vpop.xlane.xlu0 %978
    %v980 = vsel %vm102, %v924, 0.0
    %981 = vadd.xlane.f32.xlu0 %v980
    %v982 = vpop.xlane.xlu0 %981
    %v983 = vsel %vm102, %v925, 0.0
    %984 = vadd.xlane.f32.xlu0 %v983
    %v985 = vpop.xlane.xlu0 %984
    %v986 = vsel %vm102, %v926, 0.0
    %987 = vadd.xlane.f32.xlu0 %v986
    %v988 = vpop.xlane.xlu0 %987
    %v989 = vsel %vm102, %v927, 0.0
    %990 = vadd.xlane.f32.xlu0 %v989
    %v991 = vpop.xlane.xlu0 %990
    %v992 = vsel %vm102, %v928, 0.0
    %993 = vadd.xlane.f32.xlu0 %v992
    %v994 = vpop.xlane.xlu0 %993
    %v995 = vsel %vm102, %v929, 0.0
    %996 = vadd.xlane.f32.xlu0 %v995
    %v997 = vpop.xlane.xlu0 %996
    %v998 = vsel %vm102, %v930, 0.0
    %999 = vadd.xlane.f32.xlu0 %v998
    %v1000 = vpop.xlane.xlu0 %999
    %v1001 = vsel %vm102, %v931, 0.0
    %1002 = vadd.xlane.f32.xlu0 %v1001
    %v1003 = vpop.xlane.xlu0 %1002
    %v1004 = vsel %vm102, %v932, 0.0
    %1005 = vadd.xlane.f32.xlu0 %v1004
    %v1006 = vpop.xlane.xlu0 %1005
    %v1007 = vsel %vm102, %v933, 0.0
    %1008 = vadd.xlane.f32.xlu0 %v1007
    %v1009 = vpop.xlane.xlu0 %1008
    %v1010 = vsel %vm102, %v934, 0.0
    %1011 = vadd.xlane.f32.xlu0 %v1010
    %v1012 = vpop.xlane.xlu0 %1011
    %v1013 = vsel %vm102, %v935, 0.0
    %1014 = vadd.xlane.f32.xlu0 %v1013
    %v1015 = vpop.xlane.xlu0 %1014
    %v1016 = vsel %vm102, %v936, 0.0
    %1017 = vadd.xlane.f32.xlu0 %v1016
    %v1018 = vpop.xlane.xlu0 %1017
    %v1019 = vsel %vm102, %v937, 0.0
    %1020 = vadd.xlane.f32.xlu0 %v1019
    %v1021 = vpop.xlane.xlu0 %1020
    %v1022 = vsel %vm102, %v938, 0.0
    %1023 = vadd.xlane.f32.xlu0 %v1022
    %v1024 = vpop.xlane.xlu0 %1023
    %v1025 = vsel %vm102, %v939, 0.0
    %1026 = vadd.xlane.f32.xlu0 %v1025
    %v1027 = vpop.xlane.xlu0 %1026
    %v1028 = vsel %vm102, %v940, 0.0
    %1029 = vadd.xlane.f32.xlu0 %v1028
    %v1030 = vpop.xlane.xlu0 %1029
    %v1031 = vsel %vm102, %v941, 0.0
    %1032 = vadd.xlane.f32.xlu0 %v1031
    %v1033 = vpop.xlane.xlu0 %1032
    %v1034 = vsel %vm102, %v942, 0.0
    %1035 = vadd.xlane.f32.xlu0 %v1034
    %v1036 = vpop.xlane.xlu0 %1035
    %v1037 = vsel %vm102, %v943, 0.0
    %1038 = vadd.xlane.f32.xlu0 %v1037
    %v1039 = vpop.xlane.xlu0 %1038
    %v1040 = vmul.f32 %v946, 2.0
    %v1041 = vmul.f32 %v949, 2.0
    %v1042 = vmul.f32 %v952, 2.0
    %v1043 = vmul.f32 %v955, 2.0
    %v1044 = vmul.f32 %v958, 2.0
    %v1045 = vmul.f32 %v961, 2.0
    %v1046 = vmul.f32 %v964, 2.0
    %v1047 = vmul.f32 %v967, 2.0
    %v1048 = vmul.f32 %v970, 2.0
    %v1049 = vmul.f32 %v973, 2.0
    %v1050 = vmul.f32 %v976, 2.0
    %v1051 = vmul.f32 %v979, 2.0
    %v1052 = vmul.f32 %v982, 2.0
    %v1053 = vmul.f32 %v985, 2.0
    %v1054 = vmul.f32 %v988, 2.0
    %v1055 = vmul.f32 %v991, 2.0
    %v1056 = vmul.f32 %v994, 2.0
    %v1057 = vmul.f32 %v997, 2.0
    %v1058 = vmul.f32 %v1000, 2.0
    %v1059 = vmul.f32 %v1003, 2.0
    %v1060 = vmul.f32 %v1006, 2.0
    %v1061 = vmul.f32 %v1009, 2.0
    %v1062 = vmul.f32 %v1012, 2.0
    %v1063 = vmul.f32 %v1015, 2.0
    %v1064 = vmul.f32 %v1018, 2.0
    %v1065 = vmul.f32 %v1021, 2.0
    %v1066 = vmul.f32 %v1024, 2.0
    %v1067 = vmul.f32 %v1027, 2.0
    %v1068 = vmul.f32 %v1030, 2.0
    %v1069 = vmul.f32 %v1033, 2.0
    %v1070 = vmul.f32 %v1036, 2.0
    %v1071 = vmul.f32 %v1039, 2.0
    %v1073 = vsel %vm102, %v886, 0
    %1075 = vmatpush.msra.mxu0 0.0
    %1076 = vmatpush.msra.mxu0 0.0
    %1077 = vmatpush.msra.mxu0 0.0
    %1078 = vmatpush.msra.mxu0 0.0
    %1079 = vmatpush.msra.mxu0 0.0
    %1080 = vmatpush.msra.mxu0 0.0
    %1081 = vmatpush.msra.mxu0 0.0
    %1082 = vmatpush.msra.mxu0 0.0
    %1083 = vmatpush.msra.mxu0 0.0
    %1084 = vmatpush.msra.mxu0 0.0
    %1085 = vmatpush.msra.mxu0 0.0
    %1086 = vmatpush.msra.mxu0 0.0
    %1087 = vmatpush.msra.mxu0 %v66
    %1088 = vmatpush.msra.mxu0 %v65
    %1089 = vmatpush.msra.mxu0 %v64
    %1090 = vmatpush.msra.mxu0 %v63
    %1091 = vmatmul.f32.gmra.mxu0 %v1073
    %v1092 = vpop.f32.mrf.mxu0
    %v1093 = vadd.f32 0.0, %v1092
    %1094 = vdwg.mxu0
    %1095 = vmatpush.xpose.msra.mxu0 0.0
    %1096 = vmatpush.xpose.msra.mxu0 0.0
    %1097 = vmatpush.xpose.msra.mxu0 0.0
    %1098 = vmatpush.xpose.msra.mxu0 0.0
    %1099 = vmatpush.xpose.msra.mxu0 0.0
    %1100 = vmatpush.xpose.msra.mxu0 0.0
    %1101 = vmatpush.xpose.msra.mxu0 0.0
    %1102 = vmatpush.xpose.msra.mxu0 0.0
    %1103 = vmatpush.xpose.msra.mxu0 0.0
    %1104 = vmatpush.xpose.msra.mxu0 0.0
    %1105 = vmatpush.xpose.msra.mxu0 0.0
    %1106 = vmatpush.xpose.msra.mxu0 0.0
    %1107 = vmatpush.xpose.msra.mxu0 0.0
    %1108 = vmatpush.xpose.msra.mxu0 0.0
    %1109 = vmatpush.xpose.msra.mxu0 0.0
    %1110 = vmatpush.xpose.msra.mxu0 %v1073
    %1111 = vmatmul.f32.gmra.mxu0 %v127
    %v1112 = vpop.f32.mrf.mxu0
    %v1113 = vadd.f32 0.0, %v1112
    %1114 = vdwg.mxu0
    %1116 = vset.pattern.permute.xlu0 0
    %1117 = vperm.xlu0 %1116, %v1093
    %v1118 = vpop.permute.xlu0 %1117
    %v1120 = vperm.slane %v1113, 0
    %v1121 = vadd.f32 %v1118, %v1120
    %vm1122 = vcmp.gt.f32.partialorder %v1121, 0.0
    %v1123 = vmul.f32 %v1121, 0.2
    %v1124 = vsel %vm1122, %v1121, %v1123
    %v1125 = vsel %vm55, %v1124, -1e+30
    %v1126 = vsel %vm160, %v1125, -inf
    %1127 = vmax.xlane.f32.xlu0 %v1126
    %v1128 = vpop.xlane.xlu0 %1127
    %v1129 = vsub.f32 %v1125, %v1128
    %v1130 = vmul.f32 %v1129, 1.442695
    %v1131 = vpow.pop %v1130
    %v1132 = vsel %vm160, %v1131, 0.0
    %1133 = vadd.xlane.f32.xlu0 %v1132
    %v1134 = vpop.xlane.xlu0 %1133
    %v1135 = vrcp.pop %v1134
    %v1136 = vmul.f32 %v1131, %v1135
    %v1137 = vstv %s53
    %vm1138 = vcmp.ge.f32.partialorder %v1136, %v1137
    %vm1139 = vmor %vm1138, %vm60
    %v1140 = vsel %vm1139, %v1136, 0.0
    %vm1141 = vmand %vm1139, %vm62
    %v1142 = vsel %vm1141, 1.0, 0.0
    %v1144 = vsel %vm160, %v1140, 0
    %1146 = vmatpush.msra.mxu0 0.0
    %1147 = vmatpush.msra.mxu0 0.0
    %1148 = vmatpush.msra.mxu0 0.0
    %1149 = vmatpush.msra.mxu0 0.0
    %1150 = vmatpush.msra.mxu0 0.0
    %1151 = vmatpush.msra.mxu0 0.0
    %1152 = vmatpush.msra.mxu0 0.0
    %1153 = vmatpush.msra.mxu0 0.0
    %1154 = vmatpush.msra.mxu0 0.0
    %1155 = vmatpush.msra.mxu0 0.0
    %1156 = vmatpush.msra.mxu0 0.0
    %1157 = vmatpush.msra.mxu0 0.0
    %1158 = vmatpush.msra.mxu0 0.0
    %1159 = vmatpush.msra.mxu0 0.0
    %1160 = vmatpush.msra.mxu0 0.0
    %1161 = vmatpush.msra.mxu0 %v101
    %1162 = vmatmul.f32.gmra.mxu0 %v1144
    %v1163 = vpop.f32.mrf.mxu0
    %v1164 = vadd.f32 0.0, %v1163
    %1165 = vdwg.mxu0
    %1166 = vmatpush.msra.mxu0 0.0
    %1167 = vmatpush.msra.mxu0 0.0
    %1168 = vmatpush.msra.mxu0 0.0
    %1169 = vmatpush.msra.mxu0 0.0
    %1170 = vmatpush.msra.mxu0 0.0
    %1171 = vmatpush.msra.mxu0 0.0
    %1172 = vmatpush.msra.mxu0 0.0
    %1173 = vmatpush.msra.mxu0 0.0
    %1174 = vmatpush.msra.mxu0 0.0
    %1175 = vmatpush.msra.mxu0 0.0
    %1176 = vmatpush.msra.mxu0 0.0
    %1177 = vmatpush.msra.mxu0 0.0
    %1178 = vmatpush.msra.mxu0 0.0
    %1179 = vmatpush.msra.mxu0 0.0
    %1180 = vmatpush.msra.mxu0 0.0
    %1181 = vmatpush.msra.mxu0 1.0
    %1182 = vmatmul.f32.gmra.mxu0 %v1144
    %v1183 = vpop.f32.mrf.mxu0
    %v1184 = vadd.f32 0.0, %v1183
    %1185 = vdwg.mxu0
    %1186 = vmatpush.msra.mxu0 0.0
    %1187 = vmatpush.msra.mxu0 0.0
    %1188 = vmatpush.msra.mxu0 0.0
    %1189 = vmatpush.msra.mxu0 0.0
    %1190 = vmatpush.msra.mxu0 0.0
    %1191 = vmatpush.msra.mxu0 0.0
    %1192 = vmatpush.msra.mxu0 0.0
    %1193 = vmatpush.msra.mxu0 0.0
    %1194 = vmatpush.msra.mxu0 0.0
    %1195 = vmatpush.msra.mxu0 0.0
    %1196 = vmatpush.msra.mxu0 0.0
    %1197 = vmatpush.msra.mxu0 0.0
    %1198 = vmatpush.msra.mxu0 0.0
    %1199 = vmatpush.msra.mxu0 0.0
    %1200 = vmatpush.msra.mxu0 0.0
    %1201 = vmatpush.msra.mxu0 %v886
    %1202 = vmatmul.f32.gmra.mxu0 %v1144
    %v1203 = vpop.f32.mrf.mxu0
    %v1204 = vadd.f32 %v886, %v1203
    %1205 = vdwg.mxu0
    %v1206 = vmul.f32 %v1164, 0.5
    %v1207 = vsub.f32 %v1204, %v1206
    %v1208 = vmul.f32 %v101, 0.5
    %v1209 = vsub.f32 %v1207, %v1208
    %v1210 = vmul.f32 %v648, %v1040
    %v1211 = vmul.f32 %v648, %v1041
    %v1212 = vmul.f32 %v648, %v1042
    %v1213 = vmul.f32 %v648, %v1043
    %v1214 = vmul.f32 %v648, %v1044
    %v1215 = vmul.f32 %v648, %v1045
    %v1216 = vmul.f32 %v648, %v1046
    %v1217 = vmul.f32 %v648, %v1047
    %v1218 = vmul.f32 %v648, %v1048
    %v1219 = vmul.f32 %v648, %v1049
    %v1220 = vmul.f32 %v648, %v1050
    %v1221 = vmul.f32 %v648, %v1051
    %v1222 = vmul.f32 %v648, %v1052
    %v1223 = vmul.f32 %v648, %v1053
    %v1224 = vmul.f32 %v648, %v1054
    %v1225 = vmul.f32 %v648, %v1055
    %v1226 = vmul.f32 %v648, %v1056
    %v1227 = vmul.f32 %v648, %v1057
    %v1228 = vmul.f32 %v648, %v1058
    %v1229 = vmul.f32 %v648, %v1059
    %v1230 = vmul.f32 %v648, %v1060
    %v1231 = vmul.f32 %v648, %v1061
    %v1232 = vmul.f32 %v648, %v1062
    %v1233 = vmul.f32 %v648, %v1063
    %v1234 = vmul.f32 %v648, %v1064
    %v1235 = vmul.f32 %v648, %v1065
    %v1236 = vmul.f32 %v648, %v1066
    %v1237 = vmul.f32 %v648, %v1067
    %v1238 = vmul.f32 %v648, %v1068
    %v1239 = vmul.f32 %v648, %v1069
    %v1240 = vmul.f32 %v648, %v1070
    %v1241 = vmul.f32 %v648, %v1071
    %v1274 = vperm.slane %v1210, %v59
    %v1275 = vperm.slane %v1211, %v810
    %v1276 = vsel %vm812, %v1275, %v1274
    %v1277 = vperm.slane %v1212, %v814
    %v1278 = vsel %vm816, %v1277, %v1276
    %v1279 = vperm.slane %v1213, %v818
    %v1280 = vsel %vm820, %v1279, %v1278
    %v1281 = vperm.slane %v1214, %v59
    %v1282 = vperm.slane %v1215, %v810
    %v1283 = vsel %vm812, %v1282, %v1281
    %v1284 = vperm.slane %v1216, %v814
    %v1285 = vsel %vm816, %v1284, %v1283
    %v1286 = vperm.slane %v1217, %v818
    %v1287 = vsel %vm820, %v1286, %v1285
    %v1288 = vperm.slane %v1218, %v59
    %v1289 = vperm.slane %v1219, %v810
    %v1290 = vsel %vm812, %v1289, %v1288
    %v1291 = vperm.slane %v1220, %v814
    %v1292 = vsel %vm816, %v1291, %v1290
    %v1293 = vperm.slane %v1221, %v818
    %v1294 = vsel %vm820, %v1293, %v1292
    %v1295 = vperm.slane %v1222, %v59
    %v1296 = vperm.slane %v1223, %v810
    %v1297 = vsel %vm812, %v1296, %v1295
    %v1298 = vperm.slane %v1224, %v814
    %v1299 = vsel %vm816, %v1298, %v1297
    %v1300 = vperm.slane %v1225, %v818
    %v1301 = vsel %vm820, %v1300, %v1299
    %v1302 = vperm.slane %v1226, %v59
    %v1303 = vperm.slane %v1227, %v810
    %v1304 = vsel %vm812, %v1303, %v1302
    %v1305 = vperm.slane %v1228, %v814
    %v1306 = vsel %vm816, %v1305, %v1304
    %v1307 = vperm.slane %v1229, %v818
    %v1308 = vsel %vm820, %v1307, %v1306
    %v1309 = vperm.slane %v1230, %v59
    %v1310 = vperm.slane %v1231, %v810
    %v1311 = vsel %vm812, %v1310, %v1309
    %v1312 = vperm.slane %v1232, %v814
    %v1313 = vsel %vm816, %v1312, %v1311
    %v1314 = vperm.slane %v1233, %v818
    %v1315 = vsel %vm820, %v1314, %v1313
    %v1316 = vperm.slane %v1234, %v59
    %v1317 = vperm.slane %v1235, %v810
    %v1318 = vsel %vm812, %v1317, %v1316
    %v1319 = vperm.slane %v1236, %v814
    %v1320 = vsel %vm816, %v1319, %v1318
    %v1321 = vperm.slane %v1237, %v818
    %v1322 = vsel %vm820, %v1321, %v1320
    %v1323 = vperm.slane %v1238, %v59
    %v1324 = vperm.slane %v1239, %v810
    %v1325 = vsel %vm812, %v1324, %v1323
    %v1326 = vperm.slane %v1240, %v814
    %v1327 = vsel %vm816, %v1326, %v1325
    %v1328 = vperm.slane %v1241, %v818
    %v1329 = vsel %vm820, %v1328, %v1327
    %v1330 = vsel %vm871, %v1287, %v1280
    %v1331 = vsel %vm873, %v1294, %v1330
    %v1332 = vsel %vm875, %v1301, %v1331
    %v1333 = vsel %vm877, %v1308, %v1332
    %v1334 = vsel %vm879, %v1315, %v1333
    %v1335 = vsel %vm881, %v1322, %v1334
    %v1336 = vsel %vm883, %v1329, %v1335
    %v1338 = vsub.f32 %v1209, %v1336
    %v1339 = vadd.f32 %v176, %v1142
    %v1340 = vrcp.pop %v1184
    %v1341 = vmul.f32 %v1184, %v1340
    %v1342 = vsub.f32 1.0, %v1341
    %v1343 = vmul.f32 %v1340, %v1342
    %v1344 = vadd.f32 %v1340, %v1343
    %vm1345 = vweird.f32 %v1184
    %vm1346 = vweird.f32 %v1340
    %vm1347 = vmor %vm1345, %vm1346
    %v1348 = vsel %vm1347, %v1340, %v1344
    %v1349 = vand.u32 2147483647, %v1184
    %vm1350 = vcmp.eq.f32.partialorder %v1349, 8.507059e+37
    %v1351 = vand.u32 %v1184, 2147483648
    %v1352 = vor.u32 1.1754944e-38, %v1351
    %v1353 = vsel %vm1350, %v1352, %v1348
    %v1354 = vmul.f32 %v1338, %v1353
    %v1355 = vsub.f32 %v1354, %v886
    %v1357 = vrot.slane %v1355, 1
    %v1358 = vrot.slane %v1355, 2
    %v1359 = vrot.slane %v1355, 3
    %v1360 = vrot.slane %v1355, 4
    %v1361 = vrot.slane %v1355, 5
    %v1362 = vrot.slane %v1355, 6
    %v1363 = vrot.slane %v1355, 7
    %v1364 = vperm.slane %v1355, 0
    %v1365 = vperm.slane %v1357, 0
    %v1366 = vperm.slane %v1358, 0
    %v1367 = vperm.slane %v1359, 0
    %v1368 = vperm.slane %v1360, 0
    %v1369 = vperm.slane %v1361, 0
    %v1370 = vperm.slane %v1362, 0
    %v1371 = vperm.slane %v1363, 0
    %v1380 = vmul.f32 %v68, %v1364
    %v1381 = vmul.f32 %v69, %v1364
    %v1382 = vmul.f32 %v70, %v1364
    %v1383 = vmul.f32 %v71, %v1364
    %v1384 = vmul.f32 %v72, %v1365
    %v1385 = vmul.f32 %v73, %v1365
    %v1386 = vmul.f32 %v74, %v1365
    %v1387 = vmul.f32 %v75, %v1365
    %v1388 = vmul.f32 %v76, %v1366
    %v1389 = vmul.f32 %v77, %v1366
    %v1390 = vmul.f32 %v78, %v1366
    %v1391 = vmul.f32 %v79, %v1366
    %v1392 = vmul.f32 %v80, %v1367
    %v1393 = vmul.f32 %v81, %v1367
    %v1394 = vmul.f32 %v82, %v1367
    %v1395 = vmul.f32 %v83, %v1367
    %v1396 = vmul.f32 %v84, %v1368
    %v1397 = vmul.f32 %v85, %v1368
    %v1398 = vmul.f32 %v86, %v1368
    %v1399 = vmul.f32 %v87, %v1368
    %v1400 = vmul.f32 %v88, %v1369
    %v1401 = vmul.f32 %v89, %v1369
    %v1402 = vmul.f32 %v90, %v1369
    %v1403 = vmul.f32 %v91, %v1369
    %v1404 = vmul.f32 %v92, %v1370
    %v1405 = vmul.f32 %v93, %v1370
    %v1406 = vmul.f32 %v94, %v1370
    %v1407 = vmul.f32 %v95, %v1370
    %v1408 = vmul.f32 %v96, %v1371
    %v1409 = vmul.f32 %v97, %v1371
    %v1410 = vmul.f32 %v98, %v1371
    %v1411 = vmul.f32 %v99, %v1371
    %v1412 = vsel %vm102, %v1380, 0.0
    %1413 = vadd.xlane.f32.xlu0 %v1412
    %v1414 = vpop.xlane.xlu0 %1413
    %v1415 = vsel %vm102, %v1381, 0.0
    %1416 = vadd.xlane.f32.xlu0 %v1415
    %v1417 = vpop.xlane.xlu0 %1416
    %v1418 = vsel %vm102, %v1382, 0.0
    %1419 = vadd.xlane.f32.xlu0 %v1418
    %v1420 = vpop.xlane.xlu0 %1419
    %v1421 = vsel %vm102, %v1383, 0.0
    %1422 = vadd.xlane.f32.xlu0 %v1421
    %v1423 = vpop.xlane.xlu0 %1422
    %v1424 = vsel %vm102, %v1384, 0.0
    %1425 = vadd.xlane.f32.xlu0 %v1424
    %v1426 = vpop.xlane.xlu0 %1425
    %v1427 = vsel %vm102, %v1385, 0.0
    %1428 = vadd.xlane.f32.xlu0 %v1427
    %v1429 = vpop.xlane.xlu0 %1428
    %v1430 = vsel %vm102, %v1386, 0.0
    %1431 = vadd.xlane.f32.xlu0 %v1430
    %v1432 = vpop.xlane.xlu0 %1431
    %v1433 = vsel %vm102, %v1387, 0.0
    %1434 = vadd.xlane.f32.xlu0 %v1433
    %v1435 = vpop.xlane.xlu0 %1434
    %v1436 = vsel %vm102, %v1388, 0.0
    %1437 = vadd.xlane.f32.xlu0 %v1436
    %v1438 = vpop.xlane.xlu0 %1437
    %v1439 = vsel %vm102, %v1389, 0.0
    %1440 = vadd.xlane.f32.xlu0 %v1439
    %v1441 = vpop.xlane.xlu0 %1440
    %v1442 = vsel %vm102, %v1390, 0.0
    %1443 = vadd.xlane.f32.xlu0 %v1442
    %v1444 = vpop.xlane.xlu0 %1443
    %v1445 = vsel %vm102, %v1391, 0.0
    %1446 = vadd.xlane.f32.xlu0 %v1445
    %v1447 = vpop.xlane.xlu0 %1446
    %v1448 = vsel %vm102, %v1392, 0.0
    %1449 = vadd.xlane.f32.xlu0 %v1448
    %v1450 = vpop.xlane.xlu0 %1449
    %v1451 = vsel %vm102, %v1393, 0.0
    %1452 = vadd.xlane.f32.xlu0 %v1451
    %v1453 = vpop.xlane.xlu0 %1452
    %v1454 = vsel %vm102, %v1394, 0.0
    %1455 = vadd.xlane.f32.xlu0 %v1454
    %v1456 = vpop.xlane.xlu0 %1455
    %v1457 = vsel %vm102, %v1395, 0.0
    %1458 = vadd.xlane.f32.xlu0 %v1457
    %v1459 = vpop.xlane.xlu0 %1458
    %v1460 = vsel %vm102, %v1396, 0.0
    %1461 = vadd.xlane.f32.xlu0 %v1460
    %v1462 = vpop.xlane.xlu0 %1461
    %v1463 = vsel %vm102, %v1397, 0.0
    %1464 = vadd.xlane.f32.xlu0 %v1463
    %v1465 = vpop.xlane.xlu0 %1464
    %v1466 = vsel %vm102, %v1398, 0.0
    %1467 = vadd.xlane.f32.xlu0 %v1466
    %v1468 = vpop.xlane.xlu0 %1467
    %v1469 = vsel %vm102, %v1399, 0.0
    %1470 = vadd.xlane.f32.xlu0 %v1469
    %v1471 = vpop.xlane.xlu0 %1470
    %v1472 = vsel %vm102, %v1400, 0.0
    %1473 = vadd.xlane.f32.xlu0 %v1472
    %v1474 = vpop.xlane.xlu0 %1473
    %v1475 = vsel %vm102, %v1401, 0.0
    %1476 = vadd.xlane.f32.xlu0 %v1475
    %v1477 = vpop.xlane.xlu0 %1476
    %v1478 = vsel %vm102, %v1402, 0.0
    %1479 = vadd.xlane.f32.xlu0 %v1478
    %v1480 = vpop.xlane.xlu0 %1479
    %v1481 = vsel %vm102, %v1403, 0.0
    %1482 = vadd.xlane.f32.xlu0 %v1481
    %v1483 = vpop.xlane.xlu0 %1482
    %v1484 = vsel %vm102, %v1404, 0.0
    %1485 = vadd.xlane.f32.xlu0 %v1484
    %v1486 = vpop.xlane.xlu0 %1485
    %v1487 = vsel %vm102, %v1405, 0.0
    %1488 = vadd.xlane.f32.xlu0 %v1487
    %v1489 = vpop.xlane.xlu0 %1488
    %v1490 = vsel %vm102, %v1406, 0.0
    %1491 = vadd.xlane.f32.xlu0 %v1490
    %v1492 = vpop.xlane.xlu0 %1491
    %v1493 = vsel %vm102, %v1407, 0.0
    %1494 = vadd.xlane.f32.xlu0 %v1493
    %v1495 = vpop.xlane.xlu0 %1494
    %v1496 = vsel %vm102, %v1408, 0.0
    %1497 = vadd.xlane.f32.xlu0 %v1496
    %v1498 = vpop.xlane.xlu0 %1497
    %v1499 = vsel %vm102, %v1409, 0.0
    %1500 = vadd.xlane.f32.xlu0 %v1499
    %v1501 = vpop.xlane.xlu0 %1500
    %v1502 = vsel %vm102, %v1410, 0.0
    %1503 = vadd.xlane.f32.xlu0 %v1502
    %v1504 = vpop.xlane.xlu0 %1503
    %v1505 = vsel %vm102, %v1411, 0.0
    %1506 = vadd.xlane.f32.xlu0 %v1505
    %v1507 = vpop.xlane.xlu0 %1506
    %v1508 = vmul.f32 %v1414, 2.0
    %v1509 = vmul.f32 %v1417, 2.0
    %v1510 = vmul.f32 %v1420, 2.0
    %v1511 = vmul.f32 %v1423, 2.0
    %v1512 = vmul.f32 %v1426, 2.0
    %v1513 = vmul.f32 %v1429, 2.0
    %v1514 = vmul.f32 %v1432, 2.0
    %v1515 = vmul.f32 %v1435, 2.0
    %v1516 = vmul.f32 %v1438, 2.0
    %v1517 = vmul.f32 %v1441, 2.0
    %v1518 = vmul.f32 %v1444, 2.0
    %v1519 = vmul.f32 %v1447, 2.0
    %v1520 = vmul.f32 %v1450, 2.0
    %v1521 = vmul.f32 %v1453, 2.0
    %v1522 = vmul.f32 %v1456, 2.0
    %v1523 = vmul.f32 %v1459, 2.0
    %v1524 = vmul.f32 %v1462, 2.0
    %v1525 = vmul.f32 %v1465, 2.0
    %v1526 = vmul.f32 %v1468, 2.0
    %v1527 = vmul.f32 %v1471, 2.0
    %v1528 = vmul.f32 %v1474, 2.0
    %v1529 = vmul.f32 %v1477, 2.0
    %v1530 = vmul.f32 %v1480, 2.0
    %v1531 = vmul.f32 %v1483, 2.0
    %v1532 = vmul.f32 %v1486, 2.0
    %v1533 = vmul.f32 %v1489, 2.0
    %v1534 = vmul.f32 %v1492, 2.0
    %v1535 = vmul.f32 %v1495, 2.0
    %v1536 = vmul.f32 %v1498, 2.0
    %v1537 = vmul.f32 %v1501, 2.0
    %v1538 = vmul.f32 %v1504, 2.0
    %v1539 = vmul.f32 %v1507, 2.0
    %v1541 = vsel %vm102, %v1338, 0
    %1543 = vmatpush.msra.mxu0 0.0
    %1544 = vmatpush.msra.mxu0 0.0
    %1545 = vmatpush.msra.mxu0 0.0
    %1546 = vmatpush.msra.mxu0 0.0
    %1547 = vmatpush.msra.mxu0 0.0
    %1548 = vmatpush.msra.mxu0 0.0
    %1549 = vmatpush.msra.mxu0 0.0
    %1550 = vmatpush.msra.mxu0 0.0
    %1551 = vmatpush.msra.mxu0 0.0
    %1552 = vmatpush.msra.mxu0 0.0
    %1553 = vmatpush.msra.mxu0 0.0
    %1554 = vmatpush.msra.mxu0 0.0
    %1555 = vmatpush.msra.mxu0 %v66
    %1556 = vmatpush.msra.mxu0 %v65
    %1557 = vmatpush.msra.mxu0 %v64
    %1558 = vmatpush.msra.mxu0 %v63
    %1559 = vmatmul.f32.gmra.mxu0 %v1541
    %v1560 = vpop.f32.mrf.mxu0
    %v1561 = vadd.f32 0.0, %v1560
    %1562 = vdwg.mxu0
    %1563 = vmatpush.xpose.msra.mxu0 0.0
    %1564 = vmatpush.xpose.msra.mxu0 0.0
    %1565 = vmatpush.xpose.msra.mxu0 0.0
    %1566 = vmatpush.xpose.msra.mxu0 0.0
    %1567 = vmatpush.xpose.msra.mxu0 0.0
    %1568 = vmatpush.xpose.msra.mxu0 0.0
    %1569 = vmatpush.xpose.msra.mxu0 0.0
    %1570 = vmatpush.xpose.msra.mxu0 0.0
    %1571 = vmatpush.xpose.msra.mxu0 0.0
    %1572 = vmatpush.xpose.msra.mxu0 0.0
    %1573 = vmatpush.xpose.msra.mxu0 0.0
    %1574 = vmatpush.xpose.msra.mxu0 0.0
    %1575 = vmatpush.xpose.msra.mxu0 0.0
    %1576 = vmatpush.xpose.msra.mxu0 0.0
    %1577 = vmatpush.xpose.msra.mxu0 0.0
    %1578 = vmatpush.xpose.msra.mxu0 %v1541
    %1579 = vmatmul.f32.gmra.mxu0 %v127
    %v1580 = vpop.f32.mrf.mxu0
    %v1581 = vadd.f32 0.0, %v1580
    %1582 = vdwg.mxu0
    %1584 = vset.pattern.permute.xlu0 0
    %1585 = vperm.xlu0 %1584, %v1561
    %v1586 = vpop.permute.xlu0 %1585
    %v1588 = vperm.slane %v1581, 0
    %v1589 = vadd.f32 %v1586, %v1588
    %vm1590 = vcmp.gt.f32.partialorder %v1589, 0.0
    %v1591 = vmul.f32 %v1589, 0.2
    %v1592 = vsel %vm1590, %v1589, %v1591
    %v1593 = vsel %vm55, %v1592, -1e+30
    %v1594 = vsel %vm160, %v1593, -inf
    %1595 = vmax.xlane.f32.xlu0 %v1594
    %v1596 = vpop.xlane.xlu0 %1595
    %v1597 = vsub.f32 %v1593, %v1596
    %v1598 = vmul.f32 %v1597, 1.442695
    %v1599 = vpow.pop %v1598
    %v1600 = vsel %vm160, %v1599, 0.0
    %1601 = vadd.xlane.f32.xlu0 %v1600
    %v1602 = vpop.xlane.xlu0 %1601
    %v1603 = vrcp.pop %v1602
    %v1604 = vmul.f32 %v1599, %v1603
    %vm1605 = vcmp.ge.f32.partialorder %v1604, %v1137
    %vm1606 = vmor %vm1605, %vm60
    %v1607 = vsel %vm1606, %v1604, 0.0
    %vm1608 = vmand %vm1606, %vm62
    %v1609 = vsel %vm1608, 1.0, 0.0
    %v1611 = vsel %vm160, %v1607, 0
    %1613 = vmatpush.msra.mxu0 0.0
    %1614 = vmatpush.msra.mxu0 0.0
    %1615 = vmatpush.msra.mxu0 0.0
    %1616 = vmatpush.msra.mxu0 0.0
    %1617 = vmatpush.msra.mxu0 0.0
    %1618 = vmatpush.msra.mxu0 0.0
    %1619 = vmatpush.msra.mxu0 0.0
    %1620 = vmatpush.msra.mxu0 0.0
    %1621 = vmatpush.msra.mxu0 0.0
    %1622 = vmatpush.msra.mxu0 0.0
    %1623 = vmatpush.msra.mxu0 0.0
    %1624 = vmatpush.msra.mxu0 0.0
    %1625 = vmatpush.msra.mxu0 0.0
    %1626 = vmatpush.msra.mxu0 0.0
    %1627 = vmatpush.msra.mxu0 0.0
    %1628 = vmatpush.msra.mxu0 %v886
    %1629 = vmatmul.f32.gmra.mxu0 %v1611
    %v1630 = vpop.f32.mrf.mxu0
    %v1631 = vadd.f32 0.0, %v1630
    %1632 = vdwg.mxu0
    %1633 = vmatpush.msra.mxu0 0.0
    %1634 = vmatpush.msra.mxu0 0.0
    %1635 = vmatpush.msra.mxu0 0.0
    %1636 = vmatpush.msra.mxu0 0.0
    %1637 = vmatpush.msra.mxu0 0.0
    %1638 = vmatpush.msra.mxu0 0.0
    %1639 = vmatpush.msra.mxu0 0.0
    %1640 = vmatpush.msra.mxu0 0.0
    %1641 = vmatpush.msra.mxu0 0.0
    %1642 = vmatpush.msra.mxu0 0.0
    %1643 = vmatpush.msra.mxu0 0.0
    %1644 = vmatpush.msra.mxu0 0.0
    %1645 = vmatpush.msra.mxu0 0.0
    %1646 = vmatpush.msra.mxu0 0.0
    %1647 = vmatpush.msra.mxu0 0.0
    %1648 = vmatpush.msra.mxu0 %v1184
    %1649 = vmatmul.f32.gmra.mxu0 %v1611
    %v1650 = vpop.f32.mrf.mxu0
    %v1651 = vadd.f32 0.0, %v1650
    %1652 = vdwg.mxu0
    %1653 = vmatpush.msra.mxu0 0.0
    %1654 = vmatpush.msra.mxu0 0.0
    %1655 = vmatpush.msra.mxu0 0.0
    %1656 = vmatpush.msra.mxu0 0.0
    %1657 = vmatpush.msra.mxu0 0.0
    %1658 = vmatpush.msra.mxu0 0.0
    %1659 = vmatpush.msra.mxu0 0.0
    %1660 = vmatpush.msra.mxu0 0.0
    %1661 = vmatpush.msra.mxu0 0.0
    %1662 = vmatpush.msra.mxu0 0.0
    %1663 = vmatpush.msra.mxu0 0.0
    %1664 = vmatpush.msra.mxu0 0.0
    %1665 = vmatpush.msra.mxu0 0.0
    %1666 = vmatpush.msra.mxu0 0.0
    %1667 = vmatpush.msra.mxu0 0.0
    %1668 = vmatpush.msra.mxu0 %v1338
    %1669 = vmatmul.f32.gmra.mxu0 %v1611
    %v1670 = vpop.f32.mrf.mxu0
    %v1671 = vadd.f32 %v1338, %v1670
    %1672 = vdwg.mxu0
    %v1673 = vmul.f32 %v1631, 0.5
    %v1674 = vsub.f32 %v1671, %v1673
    %v1675 = vmul.f32 %v886, 0.5
    %v1676 = vsub.f32 %v1674, %v1675
    %v1677 = vmul.f32 %v648, %v1508
    %v1678 = vmul.f32 %v648, %v1509
    %v1679 = vmul.f32 %v648, %v1510
    %v1680 = vmul.f32 %v648, %v1511
    %v1681 = vmul.f32 %v648, %v1512
    %v1682 = vmul.f32 %v648, %v1513
    %v1683 = vmul.f32 %v648, %v1514
    %v1684 = vmul.f32 %v648, %v1515
    %v1685 = vmul.f32 %v648, %v1516
    %v1686 = vmul.f32 %v648, %v1517
    %v1687 = vmul.f32 %v648, %v1518
    %v1688 = vmul.f32 %v648, %v1519
    %v1689 = vmul.f32 %v648, %v1520
    %v1690 = vmul.f32 %v648, %v1521
    %v1691 = vmul.f32 %v648, %v1522
    %v1692 = vmul.f32 %v648, %v1523
    %v1693 = vmul.f32 %v648, %v1524
    %v1694 = vmul.f32 %v648, %v1525
    %v1695 = vmul.f32 %v648, %v1526
    %v1696 = vmul.f32 %v648, %v1527
    %v1697 = vmul.f32 %v648, %v1528
    %v1698 = vmul.f32 %v648, %v1529
    %v1699 = vmul.f32 %v648, %v1530
    %v1700 = vmul.f32 %v648, %v1531
    %v1701 = vmul.f32 %v648, %v1532
    %v1702 = vmul.f32 %v648, %v1533
    %v1703 = vmul.f32 %v648, %v1534
    %v1704 = vmul.f32 %v648, %v1535
    %v1705 = vmul.f32 %v648, %v1536
    %v1706 = vmul.f32 %v648, %v1537
    %v1707 = vmul.f32 %v648, %v1538
    %v1708 = vmul.f32 %v648, %v1539
    %v1741 = vperm.slane %v1677, %v59
    %v1742 = vperm.slane %v1678, %v810
    %v1743 = vsel %vm812, %v1742, %v1741
    %v1744 = vperm.slane %v1679, %v814
    %v1745 = vsel %vm816, %v1744, %v1743
    %v1746 = vperm.slane %v1680, %v818
    %v1747 = vsel %vm820, %v1746, %v1745
    %v1748 = vperm.slane %v1681, %v59
    %v1749 = vperm.slane %v1682, %v810
    %v1750 = vsel %vm812, %v1749, %v1748
    %v1751 = vperm.slane %v1683, %v814
    %v1752 = vsel %vm816, %v1751, %v1750
    %v1753 = vperm.slane %v1684, %v818
    %v1754 = vsel %vm820, %v1753, %v1752
    %v1755 = vperm.slane %v1685, %v59
    %v1756 = vperm.slane %v1686, %v810
    %v1757 = vsel %vm812, %v1756, %v1755
    %v1758 = vperm.slane %v1687, %v814
    %v1759 = vsel %vm816, %v1758, %v1757
    %v1760 = vperm.slane %v1688, %v818
    %v1761 = vsel %vm820, %v1760, %v1759
    %v1762 = vperm.slane %v1689, %v59
    %v1763 = vperm.slane %v1690, %v810
    %v1764 = vsel %vm812, %v1763, %v1762
    %v1765 = vperm.slane %v1691, %v814
    %v1766 = vsel %vm816, %v1765, %v1764
    %v1767 = vperm.slane %v1692, %v818
    %v1768 = vsel %vm820, %v1767, %v1766
    %v1769 = vperm.slane %v1693, %v59
    %v1770 = vperm.slane %v1694, %v810
    %v1771 = vsel %vm812, %v1770, %v1769
    %v1772 = vperm.slane %v1695, %v814
    %v1773 = vsel %vm816, %v1772, %v1771
    %v1774 = vperm.slane %v1696, %v818
    %v1775 = vsel %vm820, %v1774, %v1773
    %v1776 = vperm.slane %v1697, %v59
    %v1777 = vperm.slane %v1698, %v810
    %v1778 = vsel %vm812, %v1777, %v1776
    %v1779 = vperm.slane %v1699, %v814
    %v1780 = vsel %vm816, %v1779, %v1778
    %v1781 = vperm.slane %v1700, %v818
    %v1782 = vsel %vm820, %v1781, %v1780
    %v1783 = vperm.slane %v1701, %v59
    %v1784 = vperm.slane %v1702, %v810
    %v1785 = vsel %vm812, %v1784, %v1783
    %v1786 = vperm.slane %v1703, %v814
    %v1787 = vsel %vm816, %v1786, %v1785
    %v1788 = vperm.slane %v1704, %v818
    %v1789 = vsel %vm820, %v1788, %v1787
    %v1790 = vperm.slane %v1705, %v59
    %v1791 = vperm.slane %v1706, %v810
    %v1792 = vsel %vm812, %v1791, %v1790
    %v1793 = vperm.slane %v1707, %v814
    %v1794 = vsel %vm816, %v1793, %v1792
    %v1795 = vperm.slane %v1708, %v818
    %v1796 = vsel %vm820, %v1795, %v1794
    %v1797 = vsel %vm871, %v1754, %v1747
    %v1798 = vsel %vm873, %v1761, %v1797
    %v1799 = vsel %vm875, %v1768, %v1798
    %v1800 = vsel %vm877, %v1775, %v1799
    %v1801 = vsel %vm879, %v1782, %v1800
    %v1802 = vsel %vm881, %v1789, %v1801
    %v1803 = vsel %vm883, %v1796, %v1802
    %v1805 = vsub.f32 %v1676, %v1803
    %v1806 = vadd.f32 %v1339, %v1609
    %v1807 = vrcp.pop %v1651
    %v1808 = vmul.f32 %v1651, %v1807
    %v1809 = vsub.f32 1.0, %v1808
    %v1810 = vmul.f32 %v1807, %v1809
    %v1811 = vadd.f32 %v1807, %v1810
    %vm1812 = vweird.f32 %v1651
    %vm1813 = vweird.f32 %v1807
    %vm1814 = vmor %vm1812, %vm1813
    %v1815 = vsel %vm1814, %v1807, %v1811
    %v1816 = vand.u32 2147483647, %v1651
    %vm1817 = vcmp.eq.f32.partialorder %v1816, 8.507059e+37
    %v1818 = vand.u32 %v1651, 2147483648
    %v1819 = vor.u32 1.1754944e-38, %v1818
    %v1820 = vsel %vm1817, %v1819, %v1815
    %v1821 = vmul.f32 %v1805, %v1820
    %v1823 = vsel %vm102, %v1805, 0
    %1825 = vmatpush.msra.mxu0 0.0
    %1826 = vmatpush.msra.mxu0 0.0
    %1827 = vmatpush.msra.mxu0 0.0
    %1828 = vmatpush.msra.mxu0 0.0
    %1829 = vmatpush.msra.mxu0 0.0
    %1830 = vmatpush.msra.mxu0 0.0
    %1831 = vmatpush.msra.mxu0 0.0
    %1832 = vmatpush.msra.mxu0 0.0
    %1833 = vmatpush.msra.mxu0 0.0
    %1834 = vmatpush.msra.mxu0 0.0
    %1835 = vmatpush.msra.mxu0 0.0
    %1836 = vmatpush.msra.mxu0 0.0
    %1837 = vmatpush.msra.mxu0 %v66
    %1838 = vmatpush.msra.mxu0 %v65
    %1839 = vmatpush.msra.mxu0 %v64
    %1840 = vmatpush.msra.mxu0 %v63
    %1841 = vmatmul.f32.gmra.mxu0 %v1823
    %v1842 = vpop.f32.mrf.mxu0
    %v1843 = vadd.f32 0.0, %v1842
    %1844 = vdwg.mxu0
    %1845 = vmatpush.xpose.msra.mxu0 0.0
    %1846 = vmatpush.xpose.msra.mxu0 0.0
    %1847 = vmatpush.xpose.msra.mxu0 0.0
    %1848 = vmatpush.xpose.msra.mxu0 0.0
    %1849 = vmatpush.xpose.msra.mxu0 0.0
    %1850 = vmatpush.xpose.msra.mxu0 0.0
    %1851 = vmatpush.xpose.msra.mxu0 0.0
    %1852 = vmatpush.xpose.msra.mxu0 0.0
    %1853 = vmatpush.xpose.msra.mxu0 0.0
    %1854 = vmatpush.xpose.msra.mxu0 0.0
    %1855 = vmatpush.xpose.msra.mxu0 0.0
    %1856 = vmatpush.xpose.msra.mxu0 0.0
    %1857 = vmatpush.xpose.msra.mxu0 0.0
    %1858 = vmatpush.xpose.msra.mxu0 0.0
    %1859 = vmatpush.xpose.msra.mxu0 0.0
    %1860 = vmatpush.xpose.msra.mxu0 %v1823
    %1861 = vmatmul.f32.gmra.mxu0 %v127
    %v1862 = vpop.f32.mrf.mxu0
    %v1863 = vadd.f32 0.0, %v1862
    %1864 = vdwg.mxu0
    %1866 = vset.pattern.permute.xlu0 0
    %1867 = vperm.xlu0 %1866, %v1843
    %v1868 = vpop.permute.xlu0 %1867
    %v1870 = vperm.slane %v1863, 0
    %v1871 = vadd.f32 %v1868, %v1870
    %vm1872 = vcmp.gt.f32.partialorder %v1871, 0.0
    %v1873 = vmul.f32 %v1871, 0.2
    %v1874 = vsel %vm1872, %v1871, %v1873
    %v1875 = vsel %vm55, %v1874, -1e+30
    %v1876 = vsel %vm160, %v1875, -inf
    %1877 = vmax.xlane.f32.xlu0 %v1876
    %v1878 = vpop.xlane.xlu0 %1877
    %v1879 = vsub.f32 %v1875, %v1878
    %v1880 = vmul.f32 %v1879, 1.442695
    %v1881 = vpow.pop %v1880
    %v1882 = vsel %vm160, %v1881, 0.0
    %1883 = vadd.xlane.f32.xlu0 %v1882
    %v1884 = vpop.xlane.xlu0 %1883
    %v1885 = vrcp.pop %v1884
    %v1886 = vmul.f32 %v1881, %v1885
    %vm1887 = vcmp.ge.f32.partialorder %v1886, %v1137
    %vm1888 = vmor %vm1887, %vm60
    %vm1889 = vmand %vm1888, %vm62
    %v1890 = vsel %vm1889, 1.0, 0.0
    %v1891 = vadd.f32 %v1806, %v1890
    %1892 = vst.msk [vmem:[#allocation8] sm:$0xff] %vm102, %v1821
    %v1893 = vsel %vm160, %v1891, 0.0
    %1894 = vadd.xlane.f32.xlu0 %v1893
    %v1895 = vpop.xlane.xlu0 %1894
    %v1896 = vrot.slane %v1895, 4
    %v1897 = vadd.f32 %v1895, %v1896
    %v1898 = vrot.slane %v1897, 2
    %v1899 = vadd.f32 %v1897, %v1898
    %v1900 = vrot.slane %v1899, 1
    %v1901 = vadd.f32 %v1899, %v1900
    %s1902 = vtos %v1901
    %s1903 = sadd.f32 %s1902, 0.5
    %s1904 = scvt.f32.s32.to.zero.pseudo %s1903
    %s1905 = scalar_lea.smem [#allocation9], 0
    %1906 = sst [smem:[%s1905]] %s1904
    // Predicated region
    $region30: #{tpu_custom_call.1} parent=1 // pred_check
      _
    $region31: #{tpu_custom_call.1} parent=1 // pred_check_branch
      %1908 = sbr.rel (0) target = $region33
    $region32: #{tpu_custom_call.1} parent=1 // pred_region
      %1910 = vsyncadd [#allocation6], 0
      %s1912 = sshll.u32 [#allocation8], 4
      %s1913 = int_to_ptr.vmem [resolvable:$true] %s1912
      %s1914 = sshll.u32 %s7, 4
      %s1915 = int_to_ptr.hbm [resolvable:$true] %s1914
      %1917 = dma.vmem_to_hbm [thread:$0]  %s1913, 128, %s1915, [#allocation6]
    $region33: #{tpu_custom_call.1} parent=1 // pred_fallthru
      _
    // Predicated region
    $region34: #{tpu_custom_call.1} parent=1 // pred_check
      _
    $region35: #{tpu_custom_call.1} parent=1 // pred_check_branch
      %1919 = sbr.rel (0) target = $region37
    $region36: #{tpu_custom_call.1} parent=1 // pred_region
      %1921 = vsyncadd [#allocation7], 0
      %s1923 = sshll.u32 %s8, 4
      %s1924 = int_to_ptr.hbm [resolvable:$true] %s1923
      %1926 = dma.smem_to_hbm [#allocation9], 16, %s1924, [#allocation7]
    $region37: #{tpu_custom_call.1} parent=1 // pred_fallthru
      _
    // Predicated region
    $region38: #{tpu_custom_call.1} parent=1 // pred_check
      _
    $region39: #{tpu_custom_call.1} parent=1 // pred_check_branch
      %1928 = sbr.rel (0) target = $region41
    $region40: #{tpu_custom_call.1} parent=1 // pred_region
      %1930 = dma.done [#allocation6], 128
    $region41: #{tpu_custom_call.1} parent=1 // pred_fallthru
      _
    // Predicated region
    $region42: #{tpu_custom_call.1} parent=1 // pred_check
      _
    $region43: #{tpu_custom_call.1} parent=1 // pred_check_branch
      %1932 = sbr.rel (0) target = $region45
    $region44: #{tpu_custom_call.1} parent=1 // pred_region
      %1934 = dma.done [#allocation7], 16
    $region45: #{tpu_custom_call.1} parent=1 // pred_fallthru
      _
    %1935 = sfence
    %1936 = vsyncpa [#allocation5], 1
    %1937 = vsyncpa [#allocation6], 1
    %1938 = vsyncpa [#allocation7], 1

</llo_original>
